<compile_context>
chip_gen: v6e
topology: v6e:2x2x1
jax: 0.10.0
libtpu: 0.0.40
codegen_flags: <defaults>
</compile_context>

<pallas_src>
import jax
import jax.numpy as jnp
from jax.experimental import pallas as pl
from jax.experimental.pallas import tpu as pltpu


# ----------------------------------------------------------------------------
# Small helpers
# ----------------------------------------------------------------------------
def _permute_gates(w):
    """Reorder PyTorch gate blocks (i, f, g, o) -> (i, f, o, g) along axis 0."""
    i, f, g, o = jnp.split(w, 4, axis=0)
    return jnp.concatenate([i, f, o, g], axis=0)


def _vmem_capacity_bytes():
    try:
        return int(pltpu.get_tpu_info().vmem_capacity_bytes)
    except Exception:
        return 64 * 1024 * 1024          # conservative (v7x-sized) fallback


def _num_tensorcores():
    """Best-effort TensorCore count per chip (v7x = 2).  Falls back to 1."""
    try:
        info = pltpu.get_tpu_info()
        for attr in ("num_cores", "core_count", "num_tensorcores"):
            v = getattr(info, attr, None)
            if v:
                return int(v)
    except Exception:
        pass
    try:
        return int(getattr(jax.devices()[0], "num_cores", 1) or 1)
    except Exception:
        return 1


def _pick_time_block(T, Bb, E, H, x_bytes, w_bytes, budget_bytes,
                     unroll_cap=32):
    """Largest divisor of T whose double-buffered x/ctx slabs (+ resident
    weights, carries and the in-kernel gates temporary) fit the VMEM budget,
    capped to bound the unrolled inner-loop code size."""
    fixed = 2 * w_bytes * (E * 4 * H + H * 4 * H + H * H)   # weights, 2 buffers
    fixed += 4 * Bb * H * 4                                 # h/c f32 carries
    per_step = 2 * Bb * (E * x_bytes + H * 4)               # x + ctx slabs, 2 bufs
    per_step += Bb * 4 * H * x_bytes                        # gates_x temporary
    avail = max(budget_bytes - fixed, per_step)
    cap = int(max(1, min(unroll_cap, avail // per_step)))
    best = 1
    for d in range(1, min(T, cap) + 1):
        if T % d == 0:
            best = d
    return best


# ----------------------------------------------------------------------------
# Fused kernel: block input projection + time-blocked LSTM recurrence + head
# ----------------------------------------------------------------------------
def _encoder_lstm_kernel(blkmax_ref, len_ref, x_ref, wih_ref, whh_ref,
                         bias_ref, we2d_ref, be2d_ref,
                         ctx_ref, ht_ref, ct_ref, dec_ref, h_sc, c_sc):
    """One grid step = (one batch block, one time block).

    blkmax_ref : (n_bb,) int32 SMEM   max sequence length per batch block
    len_ref    : (Bb, 1) int32        per-row sequence lengths
    x_ref      : (Tt, Bb, E)          embeddings slab (matmul dtype), time-major
    wih_ref    : (E, 4H)              W_ih^T   (gate order i, f, o, g)
    whh_ref    : (H, 4H)              W_hh^T   (gate order i, f, o, g)
    bias_ref   : (1, 4H) f32          b_ih + b_hh
    we2d_ref   : (H, H)               encoder2decoder weight^T
    be2d_ref   : (1, H) f32           encoder2decoder bias
    ctx_ref    : (Tt, Bb, H) f32      per-step hidden states (zero past length)
    ht/ct/dec_ref : (Bb, H) f32       final states / decoder init
    h_sc, c_sc : (Bb, H) f32          carries across time blocks (VMEM scratch)
    """
    b = pl.program_id(0)
    tb = pl.program_id(1)
    Tt, Bb, E = x_ref.shape
    H = h_sc.shape[-1]
    cdt = whh_ref.dtype
    # bf16 activations on the bf16 matmul path halve EUP transcendental work
    # (bf16 EUP on v6e/v7x); the f32 path keeps f32 activations bit-for-bit.
    act_dt = (jnp.bfloat16
              if jnp.dtype(cdt) == jnp.dtype(jnp.bfloat16) else jnp.float32)

    @pl.when(tb == 0)
    def _():
        h_sc[...] = jnp.zeros_like(h_sc)
        c_sc[...] = jnp.zeros_like(c_sc)

    t0 = tb * Tt
    blk_live = t0 < blkmax_ref[b]      # any row of this batch block still running?

    @pl.when(blk_live)
    def _():
        lengths = len_ref[...]                      # (Bb, 1) int32
        wih = wih_ref[...]
        whh = whh_ref[...]
        bias = bias_ref[...]                        # (1, 4H) f32

        if Bb % 8 == 0:
            # Whole-block input projection: ONE MXU matmul per Tt steps.  The
            # leading-dim merge/split reshapes are layout-trivial for Bb % 8.
            x2d = x_ref[...].reshape(Tt * Bb, E).astype(cdt)
            gx_all = (jnp.dot(x2d, wih, preferred_element_type=jnp.float32)
                      + bias).astype(act_dt).reshape(Tt, Bb, 4 * H)
            gx = lambda tt: gx_all[tt]
        else:
            # Tiny-batch fallback (Bb not sublane-aligned): per-step projection,
            # still fused (no HBM gates intermediate), still off the h-chain.
            gx = lambda tt: (jnp.dot(x_ref[tt].astype(cdt), wih,
                                     preferred_element_type=jnp.float32)
                             + bias).astype(act_dt)

        h = h_sc[...]                               # f32 carries
        c = c_sc[...]
        # Short fixed trip count -> fully unrolled for the LLO scheduler.
        for tt in range(Tt):
            gates = gx(tt) + jnp.dot(h.astype(cdt), whh,
                                     preferred_element_type=jnp.float32)
            ga = gates.astype(act_dt)
            # Gate order (i, f, o, g): one sigmoid over 3H, one tanh over H.
            sig = jax.nn.sigmoid(ga[:, :3 * H])
            i_g = sig[:, 0 * H:1 * H]
            f_g = sig[:, 1 * H:2 * H]
            o_g = sig[:, 2 * H:3 * H]
            g_g = jnp.tanh(ga[:, 3 * H:])
            c_new = f_g * c + i_g * g_g                         # promotes to f32
            h_new = (o_g * jnp.tanh(c_new.astype(act_dt))).astype(jnp.float32)
            # packed-sequence mask: padded steps neither advance the state nor
            # emit ctx.  The h-select comes first: it is the only value the
            # next step's W_hh matmul depends on; the c-select and the ctx
            # store stay off that serial chain.
            valid = lengths > (t0 + tt)                         # (Bb, 1) bool
            h = jnp.where(valid, h_new, h)
            c = jnp.where(valid, c_new, c)
            ctx_ref[tt] = jnp.where(valid, h_new, 0.0)
        h_sc[...] = h
        c_sc[...] = c

    @pl.when(jnp.logical_not(blk_live))
    def _():
        # Every sequence in this batch block has already ended: the whole time
        # block is padding.  Skip all matmuls / transcendentals; ctx is zero
        # and the h/c carries are untouched.
        ctx_ref[...] = jnp.zeros_like(ctx_ref)

    @pl.when(tb == pl.num_programs(1) - 1)
    def _():
        h = h_sc[...]
        ht_ref[...] = h
        ct_ref[...] = c_sc[...]
        dec_ref[...] = jnp.tanh(
            jnp.dot(h.astype(cdt), we2d_ref[...],
                    preferred_element_type=jnp.float32) + be2d_ref[...])


# ----------------------------------------------------------------------------
# Wrapper
# ----------------------------------------------------------------------------
def encoder_lstm_forward(embeds, lengths, params, *, time_block=None,
                         batch_block=None, matmul_dtype=jnp.bfloat16):
    """embeds: (B, T, E) f32, lengths: (B,) int (sorted descending, as required
    by pack_padded_sequence).  Returns (ctx (B,T,H), decoder_init (B,H),
    c_t (B,H)) -- eval-mode dropout (identity), sub_out='tanh', zero_init=False.
    """
    B, T, E = embeds.shape
    H = params["w_hh"].shape[1]
    G = 4 * H

    # --- parameter prep (tiny, once per call, plain JAX) --------------------
    w_ih_p = _permute_gates(params["w_ih"])                     # (4H, E)
    w_hh_p = _permute_gates(params["w_hh"])                     # (4H, H)
    bias_p = _permute_gates(params["b_ih"] + params["b_hh"])    # (4H,)
    wih_t = w_ih_p.T.astype(matmul_dtype)                       # (E, 4H)
    whh_t = w_hh_p.T.astype(matmul_dtype)                       # (H, 4H)
    bias2d = bias_p.reshape(1, G).astype(jnp.float32)
    we2d_t = params["w_e2d"].T.astype(matmul_dtype)             # (H, H)
    be2d = params["b_e2d"].reshape(1, H).astype(jnp.float32)
    len2d = lengths.reshape(B, 1).astype(jnp.int32)

    # --- block sizes ---------------------------------------------------------
    if batch_block is None:
        half = B // 2
        # >=2 blocks on the 'parallel' axis lets dual-TC parts (v7x) shard the
        # recurrence across cores; on single-TC parts keep one block (splitting
        # only lengthens the serial chain).
        Bb = half if (B % 2 == 0 and half % 8 == 0
                      and _num_tensorcores() >= 2) else B
    else:
        Bb = batch_block
    assert B % Bb == 0 and (Bb == B or Bb % 8 == 0), "bad batch_block"
    n_bb = B // Bb

    x_bytes = jnp.dtype(matmul_dtype).itemsize
    vmem_cap = _vmem_capacity_bytes()            # 64 MiB v7x / 128 MiB v5e,v6e
    vmem_limit = int(min(max(vmem_cap * 3 // 4, 32 << 20), 100 << 20))
    if time_block is None:
        Tt = _pick_time_block(T, Bb, E, H, x_bytes=x_bytes, w_bytes=x_bytes,
                              budget_bytes=int(vmem_limit * 0.6))
    else:
        Tt = time_block
    assert T % Tt == 0, "time_block must divide T"
    n_tb = T // Tt

    # --- kernel inputs -------------------------------------------------------
    # Time-major, matmul-dtype embeddings (half the slab DMA on the bf16 path).
    # TODO(synk): fold this transpose and the ctx transpose below into the
    # BlockSpecs; kept as plain XLA ops for lowering robustness (the dominant
    # HBM saving -- the (T,B,4H) gates intermediate -- is already gone).
    x_tm = jnp.transpose(embeds, (1, 0, 2)).astype(matmul_dtype)   # (T, B, E)
    # Per-batch-block max length: lets the kernel skip whole trailing time
    # blocks that are pure padding (lengths are sorted, so this is common).
    blk_max = jnp.max(len2d.reshape(n_bb, Bb), axis=1).astype(jnp.int32)

    grid_spec = pltpu.PrefetchScalarGridSpec(
        num_scalar_prefetch=1,
        grid=(n_bb, n_tb),
        in_specs=[
            pl.BlockSpec((Bb, 1), lambda b, t, bm: (b, 0)),          # lengths
            pl.BlockSpec((Tt, Bb, E), lambda b, t, bm: (t, b, 0)),   # x slab
            pl.BlockSpec((E, G), lambda b, t, bm: (0, 0)),           # W_ih^T
            pl.BlockSpec((H, G), lambda b, t, bm: (0, 0)),           # W_hh^T
            pl.BlockSpec((1, G), lambda b, t, bm: (0, 0)),           # bias
            pl.BlockSpec((H, H), lambda b, t, bm: (0, 0)),           # W_e2d^T
            pl.BlockSpec((1, H), lambda b, t, bm: (0, 0)),           # b_e2d
        ],
        out_specs=(
            pl.BlockSpec((Tt, Bb, H), lambda b, t, bm: (t, b, 0)),   # ctx slab
            pl.BlockSpec((Bb, H), lambda b, t, bm: (b, 0)),          # h_t
            pl.BlockSpec((Bb, H), lambda b, t, bm: (b, 0)),          # c_t
            pl.BlockSpec((Bb, H), lambda b, t, bm: (b, 0)),          # dec init
        ),
        scratch_shapes=[
            pltpu.VMEM((Bb, H), jnp.float32),   # h carry across time blocks
            pltpu.VMEM((Bb, H), jnp.float32),   # c carry
        ],
    )

    ctx_tm, _h_t, c_t, dec = pl.pallas_call(
        _encoder_lstm_kernel,
        out_shape=(
            jax.ShapeDtypeStruct((T, B, H), jnp.float32),   # ctx (time-major)
            jax.ShapeDtypeStruct((B, H), jnp.float32),      # h_t
            jax.ShapeDtypeStruct((B, H), jnp.float32),      # c_t
            jax.ShapeDtypeStruct((B, H), jnp.float32),      # decoder_init
        ),
        grid_spec=grid_spec,
        compiler_params=pltpu.CompilerParams(
            dimension_semantics=("parallel", "arbitrary"),
            vmem_limit_bytes=vmem_limit),
    )(blk_max, len2d, x_tm, wih_t, whh_t, bias2d, we2d_t, be2d)

    # Dropout on ctx is identity (eval); zero_init=False -> return real states.
    ctx = jnp.transpose(ctx_tm, (1, 0, 2))      # back to batch-first (B, T, H)
    return ctx, dec, c_t


# ----------------------------------------------------------------------------
# Pure-JAX reference (lax.scan) matching PyTorch packed-LSTM semantics
# ----------------------------------------------------------------------------
def _reference_forward(embeds, lengths, p):
    B, T, E = embeds.shape
    H = p["w_hh"].shape[1]

    def step(carry, inp):
        h, c = carry
        xt, t = inp
        gates = xt @ p["w_ih"].T + h @ p["w_hh"].T + p["b_ih"] + p["b_hh"]
        i = jax.nn.sigmoid(gates[:, :H])
        f = jax.nn.sigmoid(gates[:, H:2 * H])
        g = jnp.tanh(gates[:, 2 * H:3 * H])
        o = jax.nn.sigmoid(gates[:, 3 * H:])
        c_new = f * c + i * g
        h_new = o * jnp.tanh(c_new)
        valid = (lengths > t)[:, None]
        h = jnp.where(valid, h_new, h)
        c = jnp.where(valid, c_new, c)
        return (h, c), jnp.where(valid, h_new, 0.0)

    x_tm = jnp.transpose(embeds, (1, 0, 2))
    (h, c), outs = jax.lax.scan(
        step, (jnp.zeros((B, H)), jnp.zeros((B, H))), (x_tm, jnp.arange(T)))
    ctx = jnp.transpose(outs, (1, 0, 2))
    dec = jnp.tanh(h @ p["w_e2d"].T + p["b_e2d"])
    return ctx, dec, c


if __name__ == "__main__":
    B, T = 16, 16
    E, H = 32, 32          # embedding_size, hidden_size
    VOCAB, NTYPES = 20, 2

    key = jax.random.PRNGKey(0)
    keys = jax.random.split(key, 12)
    s = 1.0 / jnp.sqrt(H)

    # Deterministic synthetic parameters (shapes follow nn.LSTM / nn.Linear).
    params = {
        "w_ih": jax.random.uniform(keys[0], (4 * H, E), jnp.float32, -s, s),
        "w_hh": jax.random.uniform(keys[1], (4 * H, H), jnp.float32, -s, s),
        "b_ih": jax.random.uniform(keys[2], (4 * H,), jnp.float32, -s, s),
        "b_hh": jax.random.uniform(keys[3], (4 * H,), jnp.float32, -s, s),
        "w_e2d": jax.random.uniform(keys[4], (H, H), jnp.float32, -s, s),
        "b_e2d": jax.random.uniform(keys[5], (H,), jnp.float32, -s, s),
    }
    # BERT-style embedding tables (the module receives `embedding` externally).
    word_emb = jax.random.normal(keys[6], (VOCAB, E), jnp.float32) * 0.1
    pos_emb = jax.random.normal(keys[7], (T, E), jnp.float32) * 0.1
    type_emb = jax.random.normal(keys[8], (NTYPES, E), jnp.float32) * 0.1

    inputs = jax.random.randint(keys[9], (B, T), 0, VOCAB)       # (batch, seq)
    position_ids = jnp.broadcast_to(jnp.arange(T), (B, T))
    token_type_ids = jnp.zeros((B, T), jnp.int32)
    # Sorted descending (pack_padded_sequence), max == T; the second half of
    # the batch is <= T/2 long, so its trailing time block is skipped in-kernel.
    lengths = jnp.array([16, 16, 15, 14, 12, 10, 9, 8,
                         8, 7, 6, 5, 4, 3, 2, 1], jnp.int32)

    # Embedding lookup is glue (gather) in plain JAX.
    embeds = word_emb[inputs] + pos_emb[position_ids] + type_emb[token_type_ids]

    ctx_r, dec_r, c_r = _reference_forward(embeds, lengths, params)

    # 1) f32 matmuls, 2 batch blocks x 2 time blocks: exercises the cross-block
    #    h/c carry, the per-row masking, and the whole-block padding skip.
    ctx, dec_init, c_t = encoder_lstm_forward(
        embeds, lengths, params, time_block=8, batch_block=8,
        matmul_dtype=jnp.float32)
    jax.block_until_ready((ctx, dec_init, c_t))
    assert jnp.allclose(ctx, ctx_r, atol=1e-4), "ctx mismatch (f32)"
    assert jnp.allclose(dec_init, dec_r, atol=1e-4), "decoder_init mismatch (f32)"
    assert jnp.allclose(c_t, c_r, atol=1e-4), "c_t mismatch (f32)"

    # 2) bf16 matmuls + bf16 gate activations (MXU/EUP-native on v6e/v7x),
    #    auto-picked time block / batch block.  Loose tolerance for bf16.
    ctx_b, dec_b, c_b = encoder_lstm_forward(
        embeds, lengths, params, matmul_dtype=jnp.bfloat16)
    jax.block_until_ready((ctx_b, dec_b, c_b))
    assert jnp.allclose(ctx_b, ctx_r, atol=1e-1), "ctx mismatch (bf16)"
    assert jnp.allclose(dec_b, dec_r, atol=1e-1), "decoder_init mismatch (bf16)"
    assert jnp.allclose(c_b, c_r, atol=1e-1), "c_t mismatch (bf16)"

    # 3) tiny batch (Bb == B == 2, not sublane-aligned): exercises the
    #    per-step-projection fallback path inside the fused kernel.
    ctx2_r, dec2_r, c2_r = _reference_forward(embeds[:2], lengths[:2], params)
    ctx2, dec2, c2 = encoder_lstm_forward(
        embeds[:2], lengths[:2], params, time_block=4,
        matmul_dtype=jnp.float32)
    jax.block_until_ready((ctx2, dec2, c2))
    assert jnp.allclose(ctx2, ctx2_r, atol=1e-4), "ctx mismatch (small batch)"
    assert jnp.allclose(dec2, dec2_r, atol=1e-4), "dec mismatch (small batch)"
    assert jnp.allclose(c2, c2_r, atol=1e-4), "c_t mismatch (small batch)"

    print("KERNEL_OK")
</pallas_src>

<mosaic_0001>
module attributes {stable_mosaic.version = 11 : i64} {
  func.func @_encoder_lstm_kernel(%arg0: i32, %arg1: i32, %arg2: memref<2xi32, #tpu.memory_space<smem>>, %arg3: memref<8x1xi32, #tpu.memory_space<vmem>>, %arg4: memref<8x8x32xf32, #tpu.memory_space<vmem>>, %arg5: memref<32x128xf32, #tpu.memory_space<vmem>>, %arg6: memref<32x128xf32, #tpu.memory_space<vmem>>, %arg7: memref<1x128xf32, #tpu.memory_space<vmem>>, %arg8: memref<32x32xf32, #tpu.memory_space<vmem>>, %arg9: memref<1x32xf32, #tpu.memory_space<vmem>>, %arg10: memref<8x8x32xf32, #tpu.memory_space<vmem>>, %arg11: memref<8x32xf32, #tpu.memory_space<vmem>>, %arg12: memref<8x32xf32, #tpu.memory_space<vmem>>, %arg13: memref<8x32xf32, #tpu.memory_space<vmem>>, %arg14: memref<8x32xf32, #tpu.memory_space<vmem>>, %arg15: memref<8x32xf32, #tpu.memory_space<vmem>>) attributes {dimension_semantics = [#tpu.dimension_semantics<parallel>, #tpu.dimension_semantics<arbitrary>], iteration_bounds = array<i64: 2, 2>, scalar_prefetch = 1 : i64, scratch_operands = 2 : i64, tpu.core_type = #tpu.core_type<tc>, window_params = [{transform_indices = @transform_0, window_bounds = array<i64: 8, 1>}, {transform_indices = @transform_1, window_bounds = array<i64: 8, 8, 32>}, {pipeline_mode = #tpu.pipeline_mode<synchronous>, transform_indices = @transform_2, window_bounds = array<i64: 32, 128>}, {pipeline_mode = #tpu.pipeline_mode<synchronous>, transform_indices = @transform_3, window_bounds = array<i64: 32, 128>}, {pipeline_mode = #tpu.pipeline_mode<synchronous>, transform_indices = @transform_4, window_bounds = array<i64: 1, 128>}, {pipeline_mode = #tpu.pipeline_mode<synchronous>, transform_indices = @transform_5, window_bounds = array<i64: 32, 32>}, {pipeline_mode = #tpu.pipeline_mode<synchronous>, transform_indices = @transform_6, window_bounds = array<i64: 1, 32>}, {transform_indices = @transform_7, window_bounds = array<i64: 8, 8, 32>}, {transform_indices = @transform_8, window_bounds = array<i64: 8, 32>}, {transform_indices = @transform_9, window_bounds = array<i64: 8, 32>}, {transform_indices = @transform_10, window_bounds = array<i64: 8, 32>}]} {
    %c0_i32 = arith.constant 0 : i32
    %0 = arith.cmpi eq, %arg1, %c0_i32 : i32
    %1 = arith.extui %0 : i1 to i32
    %c0_i32_0 = arith.constant 0 : i32
    %2 = arith.cmpi ne, %1, %c0_i32_0 : i32
    scf.if %2 {
      %cst = arith.constant 0.000000e+00 : f32
      %15 = vector.broadcast %cst : f32 to vector<8x32xf32>
      %c0 = arith.constant 0 : index
      %c0_4 = arith.constant 0 : index
      %16 = vector.load %arg14[%c0, %c0_4] : memref<8x32xf32, #tpu.memory_space<vmem>>, vector<8x32xf32>
      tpu.vector_store %arg14[%c0, %c0_4], %15 {strides = array<i32>} : memref<8x32xf32, #tpu.memory_space<vmem>>, vector<8x32xf32>,
      %cst_5 = arith.constant 0.000000e+00 : f32
      %17 = vector.broadcast %cst_5 : f32 to vector<8x32xf32>
      %c0_6 = arith.constant 0 : index
      %c0_7 = arith.constant 0 : index
      %18 = vector.load %arg15[%c0_6, %c0_7] : memref<8x32xf32, #tpu.memory_space<vmem>>, vector<8x32xf32>
      tpu.vector_store %arg15[%c0_6, %c0_7], %17 {strides = array<i32>} : memref<8x32xf32, #tpu.memory_space<vmem>>, vector<8x32xf32>,
    } else {
    }
    %c8_i32 = arith.constant 8 : i32
    %3 = arith.muli %arg1, %c8_i32 : i32
    %4 = arith.index_cast %arg0 : i32 to index
    %5 = memref.load %arg2[%4] : memref<2xi32, #tpu.memory_space<smem>>
    %6 = arith.cmpi slt, %3, %5 : i32
    %7 = arith.extui %6 : i1 to i32
    %c0_i32_1 = arith.constant 0 : i32
    %8 = arith.cmpi ne, %7, %c0_i32_1 : i32
    scf.if %8 {
      %c0 = arith.constant 0 : index
      %c0_4 = arith.constant 0 : index
      %15 = vector.load %arg3[%c0, %c0_4] : memref<8x1xi32, #tpu.memory_space<vmem>>, vector<8x1xi32>
      %c0_5 = arith.constant 0 : index
      %c0_6 = arith.constant 0 : index
      %16 = vector.load %arg5[%c0_5, %c0_6] : memref<32x128xf32, #tpu.memory_space<vmem>>, vector<32x128xf32>
      %c0_7 = arith.constant 0 : index
      %c0_8 = arith.constant 0 : index
      %17 = vector.load %arg6[%c0_7, %c0_8] : memref<32x128xf32, #tpu.memory_space<vmem>>, vector<32x128xf32>
      %c0_9 = arith.constant 0 : index
      %c0_10 = arith.constant 0 : index
      %18 = vector.load %arg7[%c0_9, %c0_10] : memref<1x128xf32, #tpu.memory_space<vmem>>, vector<1x128xf32>
      %c0_11 = arith.constant 0 : index
      %c0_12 = arith.constant 0 : index
      %c0_13 = arith.constant 0 : index
      %19 = vector.load %arg4[%c0_11, %c0_12, %c0_13] : memref<8x8x32xf32, #tpu.memory_space<vmem>>, vector<8x8x32xf32>
      %20 = vector.shape_cast %19 : vector<8x8x32xf32> to vector<64x32xf32>
      %cst = arith.constant dense<0.000000e+00> : vector<64x128xf32>
      %21 = tpu.matmul %20, %16, %cst {dimension_numbers = #tpu.dot_dimension_numbers<[1], [0], [0], [1], [0, 0, 1, 1], [], []>} : vector<64x32xf32>, vector<32x128xf32>, vector<64x128xf32> -> vector<64x128xf32>
      %22 = vector.broadcast %18 : vector<1x128xf32> to vector<64x128xf32>
      %23 = arith.addf %21, %22 : vector<64x128xf32>
      %24 = vector.shape_cast %23 : vector<64x128xf32> to vector<8x8x128xf32>
      %c0_14 = arith.constant 0 : index
      %c0_15 = arith.constant 0 : index
      %25 = vector.load %arg14[%c0_14, %c0_15] : memref<8x32xf32, #tpu.memory_space<vmem>>, vector<8x32xf32>
      %c0_16 = arith.constant 0 : index
      %c0_17 = arith.constant 0 : index
      %26 = vector.load %arg15[%c0_16, %c0_17] : memref<8x32xf32, #tpu.memory_space<vmem>>, vector<8x32xf32>
      %27 = vector.extract_strided_slice %24 {offsets = [0, 0, 0], sizes = [1, 8, 128], strides = [1, 1, 1]} : vector<8x8x128xf32> to vector<1x8x128xf32>
      %28 = vector.shape_cast %27 : vector<1x8x128xf32> to vector<8x128xf32>
      %cst_18 = arith.constant dense<0.000000e+00> : vector<8x128xf32>
      %29 = tpu.matmul %25, %17, %cst_18 {dimension_numbers = #tpu.dot_dimension_numbers<[1], [0], [0], [1], [0, 0, 1, 1], [], []>} : vector<8x32xf32>, vector<32x128xf32>, vector<8x128xf32> -> vector<8x128xf32>
      %30 = arith.addf %28, %29 : vector<8x128xf32>
      %31 = vector.extract_strided_slice %30 {offsets = [0, 0], sizes = [8, 96], strides = [1, 1]} : vector<8x128xf32> to vector<8x96xf32>
      %32 = arith.negf %31 : vector<8x96xf32>
      %33 = math.exp %32 : vector<8x96xf32>
      %cst_19 = arith.constant 1.000000e+00 : f32
      %34 = vector.broadcast %cst_19 : f32 to vector<8x96xf32>
      %35 = arith.addf %34, %33 : vector<8x96xf32>
      %36 = arith.divf %34, %35 : vector<8x96xf32>
      %37 = vector.extract_strided_slice %36 {offsets = [0, 0], sizes = [8, 32], strides = [1, 1]} : vector<8x96xf32> to vector<8x32xf32>
      %38 = vector.extract_strided_slice %36 {offsets = [0, 32], sizes = [8, 32], strides = [1, 1]} : vector<8x96xf32> to vector<8x32xf32>
      %39 = vector.extract_strided_slice %36 {offsets = [0, 64], sizes = [8, 32], strides = [1, 1]} : vector<8x96xf32> to vector<8x32xf32>
      %40 = vector.extract_strided_slice %30 {offsets = [0, 96], sizes = [8, 32], strides = [1, 1]} : vector<8x128xf32> to vector<8x32xf32>
      %41 = math.tanh %40 : vector<8x32xf32>
      %42 = arith.mulf %38, %26 : vector<8x32xf32>
      %43 = arith.mulf %37, %41 : vector<8x32xf32>
      %44 = arith.addf %42, %43 : vector<8x32xf32>
      %45 = math.tanh %44 : vector<8x32xf32>
      %46 = arith.mulf %39, %45 : vector<8x32xf32>
      %c0_i32_20 = arith.constant 0 : i32
      %47 = arith.addi %3, %c0_i32_20 : i32
      %48 = vector.broadcast %47 : i32 to vector<8x1xi32>
      %49 = arith.cmpi sgt, %15, %48 : vector<8x1xi32>
      %50 = vector.shape_cast %49 : vector<8x1xi1> to vector<8x1xi1>
      %51 = vector.broadcast %50 : vector<8x1xi1> to vector<8x32xi1>
      %52 = arith.select %51, %46, %25 : vector<8x32xi1>, vector<8x32xf32>
      %53 = vector.shape_cast %49 : vector<8x1xi1> to vector<8x1xi1>
      %54 = vector.broadcast %53 : vector<8x1xi1> to vector<8x32xi1>
      %55 = arith.select %54, %44, %26 : vector<8x32xi1>, vector<8x32xf32>
      %cst_21 = arith.constant 0.000000e+00 : f32
      %56 = vector.shape_cast %49 : vector<8x1xi1> to vector<8x1xi1>
      %57 = vector.broadcast %56 : vector<8x1xi1> to vector<8x32xi1>
      %58 = vector.broadcast %cst_21 : f32 to vector<8x32xf32>
      %59 = arith.select %57, %46, %58 : vector<8x32xi1>, vector<8x32xf32>
      %c0_22 = arith.constant 0 : index
      %c0_23 = arith.constant 0 : index
      %c0_24 = arith.constant 0 : index
      %60 = vector.load %arg10[%c0_22, %c0_23, %c0_24] : memref<8x8x32xf32, #tpu.memory_space<vmem>>, vector<1x8x32xf32>
      %61 = vector.shape_cast %60 : vector<1x8x32xf32> to vector<8x32xf32>
      %62 = vector.shape_cast %59 : vector<8x32xf32> to vector<1x8x32xf32>
      tpu.vector_store %arg10[%c0_22, %c0_23, %c0_24], %62 {strides = array<i32>} : memref<8x8x32xf32, #tpu.memory_space<vmem>>, vector<1x8x32xf32>,
      %63 = vector.extract_strided_slice %24 {offsets = [1, 0, 0], sizes = [1, 8, 128], strides = [1, 1, 1]} : vector<8x8x128xf32> to vector<1x8x128xf32>
      %64 = vector.shape_cast %63 : vector<1x8x128xf32> to vector<8x128xf32>
      %cst_25 = arith.constant dense<0.000000e+00> : vector<8x128xf32>
      %65 = tpu.matmul %52, %17, %cst_25 {dimension_numbers = #tpu.dot_dimension_numbers<[1], [0], [0], [1], [0, 0, 1, 1], [], []>} : vector<8x32xf32>, vector<32x128xf32>, vector<8x128xf32> -> vector<8x128xf32>
      %66 = arith.addf %64, %65 : vector<8x128xf32>
      %67 = vector.extract_strided_slice %66 {offsets = [0, 0], sizes = [8, 96], strides = [1, 1]} : vector<8x128xf32> to vector<8x96xf32>
      %68 = arith.negf %67 : vector<8x96xf32>
      %69 = math.exp %68 : vector<8x96xf32>
      %cst_26 = arith.constant 1.000000e+00 : f32
      %70 = vector.broadcast %cst_26 : f32 to vector<8x96xf32>
      %71 = arith.addf %70, %69 : vector<8x96xf32>
      %72 = arith.divf %70, %71 : vector<8x96xf32>
      %73 = vector.extract_strided_slice %72 {offsets = [0, 0], sizes = [8, 32], strides = [1, 1]} : vector<8x96xf32> to vector<8x32xf32>
      %74 = vector.extract_strided_slice %72 {offsets = [0, 32], sizes = [8, 32], strides = [1, 1]} : vector<8x96xf32> to vector<8x32xf32>
      %75 = vector.extract_strided_slice %72 {offsets = [0, 64], sizes = [8, 32], strides = [1, 1]} : vector<8x96xf32> to vector<8x32xf32>
      %76 = vector.extract_strided_slice %66 {offsets = [0, 96], sizes = [8, 32], strides = [1, 1]} : vector<8x128xf32> to vector<8x32xf32>
      %77 = math.tanh %76 : vector<8x32xf32>
      %78 = arith.mulf %74, %55 : vector<8x32xf32>
      %79 = arith.mulf %73, %77 : vector<8x32xf32>
      %80 = arith.addf %78, %79 : vector<8x32xf32>
      %81 = math.tanh %80 : vector<8x32xf32>
      %82 = arith.mulf %75, %81 : vector<8x32xf32>
      %c1_i32_27 = arith.constant 1 : i32
      %83 = arith.addi %3, %c1_i32_27 : i32
      %84 = vector.broadcast %83 : i32 to vector<8x1xi32>
      %85 = arith.cmpi sgt, %15, %84 : vector<8x1xi32>
      %86 = vector.shape_cast %85 : vector<8x1xi1> to vector<8x1xi1>
      %87 = vector.broadcast %86 : vector<8x1xi1> to vector<8x32xi1>
      %88 = arith.select %87, %82, %52 : vector<8x32xi1>, vector<8x32xf32>
      %89 = vector.shape_cast %85 : vector<8x1xi1> to vector<8x1xi1>
      %90 = vector.broadcast %89 : vector<8x1xi1> to vector<8x32xi1>
      %91 = arith.select %90, %80, %55 : vector<8x32xi1>, vector<8x32xf32>
      %cst_28 = arith.constant 0.000000e+00 : f32
      %92 = vector.shape_cast %85 : vector<8x1xi1> to vector<8x1xi1>
      %93 = vector.broadcast %92 : vector<8x1xi1> to vector<8x32xi1>
      %94 = vector.broadcast %cst_28 : f32 to vector<8x32xf32>
      %95 = arith.select %93, %82, %94 : vector<8x32xi1>, vector<8x32xf32>
      %c1 = arith.constant 1 : index
      %c0_29 = arith.constant 0 : index
      %c0_30 = arith.constant 0 : index
      %96 = vector.load %arg10[%c1, %c0_29, %c0_30] : memref<8x8x32xf32, #tpu.memory_space<vmem>>, vector<1x8x32xf32>
      %97 = vector.shape_cast %96 : vector<1x8x32xf32> to vector<8x32xf32>
      %98 = vector.shape_cast %95 : vector<8x32xf32> to vector<1x8x32xf32>
      tpu.vector_store %arg10[%c1, %c0_29, %c0_30], %98 {strides = array<i32>} : memref<8x8x32xf32, #tpu.memory_space<vmem>>, vector<1x8x32xf32>,
      %99 = vector.extract_strided_slice %24 {offsets = [2, 0, 0], sizes = [1, 8, 128], strides = [1, 1, 1]} : vector<8x8x128xf32> to vector<1x8x128xf32>
      %100 = vector.shape_cast %99 : vector<1x8x128xf32> to vector<8x128xf32>
      %cst_31 = arith.constant dense<0.000000e+00> : vector<8x128xf32>
      %101 = tpu.matmul %88, %17, %cst_31 {dimension_numbers = #tpu.dot_dimension_numbers<[1], [0], [0], [1], [0, 0, 1, 1], [], []>} : vector<8x32xf32>, vector<32x128xf32>, vector<8x128xf32> -> vector<8x128xf32>
      %102 = arith.addf %100, %101 : vector<8x128xf32>
      %103 = vector.extract_strided_slice %102 {offsets = [0, 0], sizes = [8, 96], strides = [1, 1]} : vector<8x128xf32> to vector<8x96xf32>
      %104 = arith.negf %103 : vector<8x96xf32>
      %105 = math.exp %104 : vector<8x96xf32>
      %cst_32 = arith.constant 1.000000e+00 : f32
      %106 = vector.broadcast %cst_32 : f32 to vector<8x96xf32>
      %107 = arith.addf %106, %105 : vector<8x96xf32>
      %108 = arith.divf %106, %107 : vector<8x96xf32>
      %109 = vector.extract_strided_slice %108 {offsets = [0, 0], sizes = [8, 32], strides = [1, 1]} : vector<8x96xf32> to vector<8x32xf32>
      %110 = vector.extract_strided_slice %108 {offsets = [0, 32], sizes = [8, 32], strides = [1, 1]} : vector<8x96xf32> to vector<8x32xf32>
      %111 = vector.extract_strided_slice %108 {offsets = [0, 64], sizes = [8, 32], strides = [1, 1]} : vector<8x96xf32> to vector<8x32xf32>
      %112 = vector.extract_strided_slice %102 {offsets = [0, 96], sizes = [8, 32], strides = [1, 1]} : vector<8x128xf32> to vector<8x32xf32>
      %113 = math.tanh %112 : vector<8x32xf32>
      %114 = arith.mulf %110, %91 : vector<8x32xf32>
      %115 = arith.mulf %109, %113 : vector<8x32xf32>
      %116 = arith.addf %114, %115 : vector<8x32xf32>
      %117 = math.tanh %116 : vector<8x32xf32>
      %118 = arith.mulf %111, %117 : vector<8x32xf32>
      %c2_i32 = arith.constant 2 : i32
      %119 = arith.addi %3, %c2_i32 : i32
      %120 = vector.broadcast %119 : i32 to vector<8x1xi32>
      %121 = arith.cmpi sgt, %15, %120 : vector<8x1xi32>
      %122 = vector.shape_cast %121 : vector<8x1xi1> to vector<8x1xi1>
      %123 = vector.broadcast %122 : vector<8x1xi1> to vector<8x32xi1>
      %124 = arith.select %123, %118, %88 : vector<8x32xi1>, vector<8x32xf32>
      %125 = vector.shape_cast %121 : vector<8x1xi1> to vector<8x1xi1>
      %126 = vector.broadcast %125 : vector<8x1xi1> to vector<8x32xi1>
      %127 = arith.select %126, %116, %91 : vector<8x32xi1>, vector<8x32xf32>
      %cst_33 = arith.constant 0.000000e+00 : f32
      %128 = vector.shape_cast %121 : vector<8x1xi1> to vector<8x1xi1>
      %129 = vector.broadcast %128 : vector<8x1xi1> to vector<8x32xi1>
      %130 = vector.broadcast %cst_33 : f32 to vector<8x32xf32>
      %131 = arith.select %129, %118, %130 : vector<8x32xi1>, vector<8x32xf32>
      %c2 = arith.constant 2 : index
      %c0_34 = arith.constant 0 : index
      %c0_35 = arith.constant 0 : index
      %132 = vector.load %arg10[%c2, %c0_34, %c0_35] : memref<8x8x32xf32, #tpu.memory_space<vmem>>, vector<1x8x32xf32>
      %133 = vector.shape_cast %132 : vector<1x8x32xf32> to vector<8x32xf32>
      %134 = vector.shape_cast %131 : vector<8x32xf32> to vector<1x8x32xf32>
      tpu.vector_store %arg10[%c2, %c0_34, %c0_35], %134 {strides = array<i32>} : memref<8x8x32xf32, #tpu.memory_space<vmem>>, vector<1x8x32xf32>,
      %135 = vector.extract_strided_slice %24 {offsets = [3, 0, 0], sizes = [1, 8, 128], strides = [1, 1, 1]} : vector<8x8x128xf32> to vector<1x8x128xf32>
      %136 = vector.shape_cast %135 : vector<1x8x128xf32> to vector<8x128xf32>
      %cst_36 = arith.constant dense<0.000000e+00> : vector<8x128xf32>
      %137 = tpu.matmul %124, %17, %cst_36 {dimension_numbers = #tpu.dot_dimension_numbers<[1], [0], [0], [1], [0, 0, 1, 1], [], []>} : vector<8x32xf32>, vector<32x128xf32>, vector<8x128xf32> -> vector<8x128xf32>
      %138 = arith.addf %136, %137 : vector<8x128xf32>
      %139 = vector.extract_strided_slice %138 {offsets = [0, 0], sizes = [8, 96], strides = [1, 1]} : vector<8x128xf32> to vector<8x96xf32>
      %140 = arith.negf %139 : vector<8x96xf32>
      %141 = math.exp %140 : vector<8x96xf32>
      %cst_37 = arith.constant 1.000000e+00 : f32
      %142 = vector.broadcast %cst_37 : f32 to vector<8x96xf32>
      %143 = arith.addf %142, %141 : vector<8x96xf32>
      %144 = arith.divf %142, %143 : vector<8x96xf32>
      %145 = vector.extract_strided_slice %144 {offsets = [0, 0], sizes = [8, 32], strides = [1, 1]} : vector<8x96xf32> to vector<8x32xf32>
      %146 = vector.extract_strided_slice %144 {offsets = [0, 32], sizes = [8, 32], strides = [1, 1]} : vector<8x96xf32> to vector<8x32xf32>
      %147 = vector.extract_strided_slice %144 {offsets = [0, 64], sizes = [8, 32], strides = [1, 1]} : vector<8x96xf32> to vector<8x32xf32>
      %148 = vector.extract_strided_slice %138 {offsets = [0, 96], sizes = [8, 32], strides = [1, 1]} : vector<8x128xf32> to vector<8x32xf32>
      %149 = math.tanh %148 : vector<8x32xf32>
      %150 = arith.mulf %146, %127 : vector<8x32xf32>
      %151 = arith.mulf %145, %149 : vector<8x32xf32>
      %152 = arith.addf %150, %151 : vector<8x32xf32>
      %153 = math.tanh %152 : vector<8x32xf32>
      %154 = arith.mulf %147, %153 : vector<8x32xf32>
      %c3_i32 = arith.constant 3 : i32
      %155 = arith.addi %3, %c3_i32 : i32
      %156 = vector.broadcast %155 : i32 to vector<8x1xi32>
      %157 = arith.cmpi sgt, %15, %156 : vector<8x1xi32>
      %158 = vector.shape_cast %157 : vector<8x1xi1> to vector<8x1xi1>
      %159 = vector.broadcast %158 : vector<8x1xi1> to vector<8x32xi1>
      %160 = arith.select %159, %154, %124 : vector<8x32xi1>, vector<8x32xf32>
      %161 = vector.shape_cast %157 : vector<8x1xi1> to vector<8x1xi1>
      %162 = vector.broadcast %161 : vector<8x1xi1> to vector<8x32xi1>
      %163 = arith.select %162, %152, %127 : vector<8x32xi1>, vector<8x32xf32>
      %cst_38 = arith.constant 0.000000e+00 : f32
      %164 = vector.shape_cast %157 : vector<8x1xi1> to vector<8x1xi1>
      %165 = vector.broadcast %164 : vector<8x1xi1> to vector<8x32xi1>
      %166 = vector.broadcast %cst_38 : f32 to vector<8x32xf32>
      %167 = arith.select %165, %154, %166 : vector<8x32xi1>, vector<8x32xf32>
      %c3 = arith.constant 3 : index
      %c0_39 = arith.constant 0 : index
      %c0_40 = arith.constant 0 : index
      %168 = vector.load %arg10[%c3, %c0_39, %c0_40] : memref<8x8x32xf32, #tpu.memory_space<vmem>>, vector<1x8x32xf32>
      %169 = vector.shape_cast %168 : vector<1x8x32xf32> to vector<8x32xf32>
      %170 = vector.shape_cast %167 : vector<8x32xf32> to vector<1x8x32xf32>
      tpu.vector_store %arg10[%c3, %c0_39, %c0_40], %170 {strides = array<i32>} : memref<8x8x32xf32, #tpu.memory_space<vmem>>, vector<1x8x32xf32>,
      %171 = vector.extract_strided_slice %24 {offsets = [4, 0, 0], sizes = [1, 8, 128], strides = [1, 1, 1]} : vector<8x8x128xf32> to vector<1x8x128xf32>
      %172 = vector.shape_cast %171 : vector<1x8x128xf32> to vector<8x128xf32>
      %cst_41 = arith.constant dense<0.000000e+00> : vector<8x128xf32>
      %173 = tpu.matmul %160, %17, %cst_41 {dimension_numbers = #tpu.dot_dimension_numbers<[1], [0], [0], [1], [0, 0, 1, 1], [], []>} : vector<8x32xf32>, vector<32x128xf32>, vector<8x128xf32> -> vector<8x128xf32>
      %174 = arith.addf %172, %173 : vector<8x128xf32>
      %175 = vector.extract_strided_slice %174 {offsets = [0, 0], sizes = [8, 96], strides = [1, 1]} : vector<8x128xf32> to vector<8x96xf32>
      %176 = arith.negf %175 : vector<8x96xf32>
      %177 = math.exp %176 : vector<8x96xf32>
      %cst_42 = arith.constant 1.000000e+00 : f32
      %178 = vector.broadcast %cst_42 : f32 to vector<8x96xf32>
      %179 = arith.addf %178, %177 : vector<8x96xf32>
      %180 = arith.divf %178, %179 : vector<8x96xf32>
      %181 = vector.extract_strided_slice %180 {offsets = [0, 0], sizes = [8, 32], strides = [1, 1]} : vector<8x96xf32> to vector<8x32xf32>
      %182 = vector.extract_strided_slice %180 {offsets = [0, 32], sizes = [8, 32], strides = [1, 1]} : vector<8x96xf32> to vector<8x32xf32>
      %183 = vector.extract_strided_slice %180 {offsets = [0, 64], sizes = [8, 32], strides = [1, 1]} : vector<8x96xf32> to vector<8x32xf32>
      %184 = vector.extract_strided_slice %174 {offsets = [0, 96], sizes = [8, 32], strides = [1, 1]} : vector<8x128xf32> to vector<8x32xf32>
      %185 = math.tanh %184 : vector<8x32xf32>
      %186 = arith.mulf %182, %163 : vector<8x32xf32>
      %187 = arith.mulf %181, %185 : vector<8x32xf32>
      %188 = arith.addf %186, %187 : vector<8x32xf32>
      %189 = math.tanh %188 : vector<8x32xf32>
      %190 = arith.mulf %183, %189 : vector<8x32xf32>
      %c4_i32 = arith.constant 4 : i32
      %191 = arith.addi %3, %c4_i32 : i32
      %192 = vector.broadcast %191 : i32 to vector<8x1xi32>
      %193 = arith.cmpi sgt, %15, %192 : vector<8x1xi32>
      %194 = vector.shape_cast %193 : vector<8x1xi1> to vector<8x1xi1>
      %195 = vector.broadcast %194 : vector<8x1xi1> to vector<8x32xi1>
      %196 = arith.select %195, %190, %160 : vector<8x32xi1>, vector<8x32xf32>
      %197 = vector.shape_cast %193 : vector<8x1xi1> to vector<8x1xi1>
      %198 = vector.broadcast %197 : vector<8x1xi1> to vector<8x32xi1>
      %199 = arith.select %198, %188, %163 : vector<8x32xi1>, vector<8x32xf32>
      %cst_43 = arith.constant 0.000000e+00 : f32
      %200 = vector.shape_cast %193 : vector<8x1xi1> to vector<8x1xi1>
      %201 = vector.broadcast %200 : vector<8x1xi1> to vector<8x32xi1>
      %202 = vector.broadcast %cst_43 : f32 to vector<8x32xf32>
      %203 = arith.select %201, %190, %202 : vector<8x32xi1>, vector<8x32xf32>
      %c4 = arith.constant 4 : index
      %c0_44 = arith.constant 0 : index
      %c0_45 = arith.constant 0 : index
      %204 = vector.load %arg10[%c4, %c0_44, %c0_45] : memref<8x8x32xf32, #tpu.memory_space<vmem>>, vector<1x8x32xf32>
      %205 = vector.shape_cast %204 : vector<1x8x32xf32> to vector<8x32xf32>
      %206 = vector.shape_cast %203 : vector<8x32xf32> to vector<1x8x32xf32>
      tpu.vector_store %arg10[%c4, %c0_44, %c0_45], %206 {strides = array<i32>} : memref<8x8x32xf32, #tpu.memory_space<vmem>>, vector<1x8x32xf32>,
      %207 = vector.extract_strided_slice %24 {offsets = [5, 0, 0], sizes = [1, 8, 128], strides = [1, 1, 1]} : vector<8x8x128xf32> to vector<1x8x128xf32>
      %208 = vector.shape_cast %207 : vector<1x8x128xf32> to vector<8x128xf32>
      %cst_46 = arith.constant dense<0.000000e+00> : vector<8x128xf32>
      %209 = tpu.matmul %196, %17, %cst_46 {dimension_numbers = #tpu.dot_dimension_numbers<[1], [0], [0], [1], [0, 0, 1, 1], [], []>} : vector<8x32xf32>, vector<32x128xf32>, vector<8x128xf32> -> vector<8x128xf32>
      %210 = arith.addf %208, %209 : vector<8x128xf32>
      %211 = vector.extract_strided_slice %210 {offsets = [0, 0], sizes = [8, 96], strides = [1, 1]} : vector<8x128xf32> to vector<8x96xf32>
      %212 = arith.negf %211 : vector<8x96xf32>
      %213 = math.exp %212 : vector<8x96xf32>
      %cst_47 = arith.constant 1.000000e+00 : f32
      %214 = vector.broadcast %cst_47 : f32 to vector<8x96xf32>
      %215 = arith.addf %214, %213 : vector<8x96xf32>
      %216 = arith.divf %214, %215 : vector<8x96xf32>
      %217 = vector.extract_strided_slice %216 {offsets = [0, 0], sizes = [8, 32], strides = [1, 1]} : vector<8x96xf32> to vector<8x32xf32>
      %218 = vector.extract_strided_slice %216 {offsets = [0, 32], sizes = [8, 32], strides = [1, 1]} : vector<8x96xf32> to vector<8x32xf32>
      %219 = vector.extract_strided_slice %216 {offsets = [0, 64], sizes = [8, 32], strides = [1, 1]} : vector<8x96xf32> to vector<8x32xf32>
      %220 = vector.extract_strided_slice %210 {offsets = [0, 96], sizes = [8, 32], strides = [1, 1]} : vector<8x128xf32> to vector<8x32xf32>
      %221 = math.tanh %220 : vector<8x32xf32>
      %222 = arith.mulf %218, %199 : vector<8x32xf32>
      %223 = arith.mulf %217, %221 : vector<8x32xf32>
      %224 = arith.addf %222, %223 : vector<8x32xf32>
      %225 = math.tanh %224 : vector<8x32xf32>
      %226 = arith.mulf %219, %225 : vector<8x32xf32>
      %c5_i32 = arith.constant 5 : i32
      %227 = arith.addi %3, %c5_i32 : i32
      %228 = vector.broadcast %227 : i32 to vector<8x1xi32>
      %229 = arith.cmpi sgt, %15, %228 : vector<8x1xi32>
      %230 = vector.shape_cast %229 : vector<8x1xi1> to vector<8x1xi1>
      %231 = vector.broadcast %230 : vector<8x1xi1> to vector<8x32xi1>
      %232 = arith.select %231, %226, %196 : vector<8x32xi1>, vector<8x32xf32>
      %233 = vector.shape_cast %229 : vector<8x1xi1> to vector<8x1xi1>
      %234 = vector.broadcast %233 : vector<8x1xi1> to vector<8x32xi1>
      %235 = arith.select %234, %224, %199 : vector<8x32xi1>, vector<8x32xf32>
      %cst_48 = arith.constant 0.000000e+00 : f32
      %236 = vector.shape_cast %229 : vector<8x1xi1> to vector<8x1xi1>
      %237 = vector.broadcast %236 : vector<8x1xi1> to vector<8x32xi1>
      %238 = vector.broadcast %cst_48 : f32 to vector<8x32xf32>
      %239 = arith.select %237, %226, %238 : vector<8x32xi1>, vector<8x32xf32>
      %c5 = arith.constant 5 : index
      %c0_49 = arith.constant 0 : index
      %c0_50 = arith.constant 0 : index
      %240 = vector.load %arg10[%c5, %c0_49, %c0_50] : memref<8x8x32xf32, #tpu.memory_space<vmem>>, vector<1x8x32xf32>
      %241 = vector.shape_cast %240 : vector<1x8x32xf32> to vector<8x32xf32>
      %242 = vector.shape_cast %239 : vector<8x32xf32> to vector<1x8x32xf32>
      tpu.vector_store %arg10[%c5, %c0_49, %c0_50], %242 {strides = array<i32>} : memref<8x8x32xf32, #tpu.memory_space<vmem>>, vector<1x8x32xf32>,
      %243 = vector.extract_strided_slice %24 {offsets = [6, 0, 0], sizes = [1, 8, 128], strides = [1, 1, 1]} : vector<8x8x128xf32> to vector<1x8x128xf32>
      %244 = vector.shape_cast %243 : vector<1x8x128xf32> to vector<8x128xf32>
      %cst_51 = arith.constant dense<0.000000e+00> : vector<8x128xf32>
      %245 = tpu.matmul %232, %17, %cst_51 {dimension_numbers = #tpu.dot_dimension_numbers<[1], [0], [0], [1], [0, 0, 1, 1], [], []>} : vector<8x32xf32>, vector<32x128xf32>, vector<8x128xf32> -> vector<8x128xf32>
      %246 = arith.addf %244, %245 : vector<8x128xf32>
      %247 = vector.extract_strided_slice %246 {offsets = [0, 0], sizes = [8, 96], strides = [1, 1]} : vector<8x128xf32> to vector<8x96xf32>
      %248 = arith.negf %247 : vector<8x96xf32>
      %249 = math.exp %248 : vector<8x96xf32>
      %cst_52 = arith.constant 1.000000e+00 : f32
      %250 = vector.broadcast %cst_52 : f32 to vector<8x96xf32>
      %251 = arith.addf %250, %249 : vector<8x96xf32>
      %252 = arith.divf %250, %251 : vector<8x96xf32>
      %253 = vector.extract_strided_slice %252 {offsets = [0, 0], sizes = [8, 32], strides = [1, 1]} : vector<8x96xf32> to vector<8x32xf32>
      %254 = vector.extract_strided_slice %252 {offsets = [0, 32], sizes = [8, 32], strides = [1, 1]} : vector<8x96xf32> to vector<8x32xf32>
      %255 = vector.extract_strided_slice %252 {offsets = [0, 64], sizes = [8, 32], strides = [1, 1]} : vector<8x96xf32> to vector<8x32xf32>
      %256 = vector.extract_strided_slice %246 {offsets = [0, 96], sizes = [8, 32], strides = [1, 1]} : vector<8x128xf32> to vector<8x32xf32>
      %257 = math.tanh %256 : vector<8x32xf32>
      %258 = arith.mulf %254, %235 : vector<8x32xf32>
      %259 = arith.mulf %253, %257 : vector<8x32xf32>
      %260 = arith.addf %258, %259 : vector<8x32xf32>
      %261 = math.tanh %260 : vector<8x32xf32>
      %262 = arith.mulf %255, %261 : vector<8x32xf32>
      %c6_i32 = arith.constant 6 : i32
      %263 = arith.addi %3, %c6_i32 : i32
      %264 = vector.broadcast %263 : i32 to vector<8x1xi32>
      %265 = arith.cmpi sgt, %15, %264 : vector<8x1xi32>
      %266 = vector.shape_cast %265 : vector<8x1xi1> to vector<8x1xi1>
      %267 = vector.broadcast %266 : vector<8x1xi1> to vector<8x32xi1>
      %268 = arith.select %267, %262, %232 : vector<8x32xi1>, vector<8x32xf32>
      %269 = vector.shape_cast %265 : vector<8x1xi1> to vector<8x1xi1>
      %270 = vector.broadcast %269 : vector<8x1xi1> to vector<8x32xi1>
      %271 = arith.select %270, %260, %235 : vector<8x32xi1>, vector<8x32xf32>
      %cst_53 = arith.constant 0.000000e+00 : f32
      %272 = vector.shape_cast %265 : vector<8x1xi1> to vector<8x1xi1>
      %273 = vector.broadcast %272 : vector<8x1xi1> to vector<8x32xi1>
      %274 = vector.broadcast %cst_53 : f32 to vector<8x32xf32>
      %275 = arith.select %273, %262, %274 : vector<8x32xi1>, vector<8x32xf32>
      %c6 = arith.constant 6 : index
      %c0_54 = arith.constant 0 : index
      %c0_55 = arith.constant 0 : index
      %276 = vector.load %arg10[%c6, %c0_54, %c0_55] : memref<8x8x32xf32, #tpu.memory_space<vmem>>, vector<1x8x32xf32>
      %277 = vector.shape_cast %276 : vector<1x8x32xf32> to vector<8x32xf32>
      %278 = vector.shape_cast %275 : vector<8x32xf32> to vector<1x8x32xf32>
      tpu.vector_store %arg10[%c6, %c0_54, %c0_55], %278 {strides = array<i32>} : memref<8x8x32xf32, #tpu.memory_space<vmem>>, vector<1x8x32xf32>,
      %279 = vector.extract_strided_slice %24 {offsets = [7, 0, 0], sizes = [1, 8, 128], strides = [1, 1, 1]} : vector<8x8x128xf32> to vector<1x8x128xf32>
      %280 = vector.shape_cast %279 : vector<1x8x128xf32> to vector<8x128xf32>
      %cst_56 = arith.constant dense<0.000000e+00> : vector<8x128xf32>
      %281 = tpu.matmul %268, %17, %cst_56 {dimension_numbers = #tpu.dot_dimension_numbers<[1], [0], [0], [1], [0, 0, 1, 1], [], []>} : vector<8x32xf32>, vector<32x128xf32>, vector<8x128xf32> -> vector<8x128xf32>
      %282 = arith.addf %280, %281 : vector<8x128xf32>
      %283 = vector.extract_strided_slice %282 {offsets = [0, 0], sizes = [8, 96], strides = [1, 1]} : vector<8x128xf32> to vector<8x96xf32>
      %284 = arith.negf %283 : vector<8x96xf32>
      %285 = math.exp %284 : vector<8x96xf32>
      %cst_57 = arith.constant 1.000000e+00 : f32
      %286 = vector.broadcast %cst_57 : f32 to vector<8x96xf32>
      %287 = arith.addf %286, %285 : vector<8x96xf32>
      %288 = arith.divf %286, %287 : vector<8x96xf32>
      %289 = vector.extract_strided_slice %288 {offsets = [0, 0], sizes = [8, 32], strides = [1, 1]} : vector<8x96xf32> to vector<8x32xf32>
      %290 = vector.extract_strided_slice %288 {offsets = [0, 32], sizes = [8, 32], strides = [1, 1]} : vector<8x96xf32> to vector<8x32xf32>
      %291 = vector.extract_strided_slice %288 {offsets = [0, 64], sizes = [8, 32], strides = [1, 1]} : vector<8x96xf32> to vector<8x32xf32>
      %292 = vector.extract_strided_slice %282 {offsets = [0, 96], sizes = [8, 32], strides = [1, 1]} : vector<8x128xf32> to vector<8x32xf32>
      %293 = math.tanh %292 : vector<8x32xf32>
      %294 = arith.mulf %290, %271 : vector<8x32xf32>
      %295 = arith.mulf %289, %293 : vector<8x32xf32>
      %296 = arith.addf %294, %295 : vector<8x32xf32>
      %297 = math.tanh %296 : vector<8x32xf32>
      %298 = arith.mulf %291, %297 : vector<8x32xf32>
      %c7_i32 = arith.constant 7 : i32
      %299 = arith.addi %3, %c7_i32 : i32
      %300 = vector.broadcast %299 : i32 to vector<8x1xi32>
      %301 = arith.cmpi sgt, %15, %300 : vector<8x1xi32>
      %302 = vector.shape_cast %301 : vector<8x1xi1> to vector<8x1xi1>
      %303 = vector.broadcast %302 : vector<8x1xi1> to vector<8x32xi1>
      %304 = arith.select %303, %298, %268 : vector<8x32xi1>, vector<8x32xf32>
      %305 = vector.shape_cast %301 : vector<8x1xi1> to vector<8x1xi1>
      %306 = vector.broadcast %305 : vector<8x1xi1> to vector<8x32xi1>
      %307 = arith.select %306, %296, %271 : vector<8x32xi1>, vector<8x32xf32>
      %cst_58 = arith.constant 0.000000e+00 : f32
      %308 = vector.shape_cast %301 : vector<8x1xi1> to vector<8x1xi1>
      %309 = vector.broadcast %308 : vector<8x1xi1> to vector<8x32xi1>
      %310 = vector.broadcast %cst_58 : f32 to vector<8x32xf32>
      %311 = arith.select %309, %298, %310 : vector<8x32xi1>, vector<8x32xf32>
      %c7 = arith.constant 7 : index
      %c0_59 = arith.constant 0 : index
      %c0_60 = arith.constant 0 : index
      %312 = vector.load %arg10[%c7, %c0_59, %c0_60] : memref<8x8x32xf32, #tpu.memory_space<vmem>>, vector<1x8x32xf32>
      %313 = vector.shape_cast %312 : vector<1x8x32xf32> to vector<8x32xf32>
      %314 = vector.shape_cast %311 : vector<8x32xf32> to vector<1x8x32xf32>
      tpu.vector_store %arg10[%c7, %c0_59, %c0_60], %314 {strides = array<i32>} : memref<8x8x32xf32, #tpu.memory_space<vmem>>, vector<1x8x32xf32>,
      %c0_61 = arith.constant 0 : index
      %c0_62 = arith.constant 0 : index
      %315 = vector.load %arg14[%c0_61, %c0_62] : memref<8x32xf32, #tpu.memory_space<vmem>>, vector<8x32xf32>
      tpu.vector_store %arg14[%c0_61, %c0_62], %304 {strides = array<i32>} : memref<8x32xf32, #tpu.memory_space<vmem>>, vector<8x32xf32>,
      %c0_63 = arith.constant 0 : index
      %c0_64 = arith.constant 0 : index
      %316 = vector.load %arg15[%c0_63, %c0_64] : memref<8x32xf32, #tpu.memory_space<vmem>>, vector<8x32xf32>
      tpu.vector_store %arg15[%c0_63, %c0_64], %307 {strides = array<i32>} : memref<8x32xf32, #tpu.memory_space<vmem>>, vector<8x32xf32>,
    } else {
    }
    %true = arith.constant true
    %9 = arith.xori %6, %true : i1
    %10 = arith.extui %9 : i1 to i32
    %c0_i32_2 = arith.constant 0 : i32
    %11 = arith.cmpi ne, %10, %c0_i32_2 : i32
    scf.if %11 {
      %cst = arith.constant 0.000000e+00 : f32
      %15 = vector.broadcast %cst : f32 to vector<8x8x32xf32>
      %c0 = arith.constant 0 : index
      %c0_4 = arith.constant 0 : index
      %c0_5 = arith.constant 0 : index
      %16 = vector.load %arg10[%c0, %c0_4, %c0_5] : memref<8x8x32xf32, #tpu.memory_space<vmem>>, vector<8x8x32xf32>
      tpu.vector_store %arg10[%c0, %c0_4, %c0_5], %15 {strides = array<i32>} : memref<8x8x32xf32, #tpu.memory_space<vmem>>, vector<8x8x32xf32>,
    } else {
    }
    %c1_i32 = arith.constant 1 : i32
    %12 = arith.cmpi eq, %arg1, %c1_i32 : i32
    %13 = arith.extui %12 : i1 to i32
    %c0_i32_3 = arith.constant 0 : i32
    %14 = arith.cmpi ne, %13, %c0_i32_3 : i32
    scf.if %14 {
      %c0 = arith.constant 0 : index
      %c0_4 = arith.constant 0 : index
      %15 = vector.load %arg14[%c0, %c0_4] : memref<8x32xf32, #tpu.memory_space<vmem>>, vector<8x32xf32>
      %c0_5 = arith.constant 0 : index
      %c0_6 = arith.constant 0 : index
      %16 = vector.load %arg11[%c0_5, %c0_6] : memref<8x32xf32, #tpu.memory_space<vmem>>, vector<8x32xf32>
      tpu.vector_store %arg11[%c0_5, %c0_6], %15 {strides = array<i32>} : memref<8x32xf32, #tpu.memory_space<vmem>>, vector<8x32xf32>,
      %c0_7 = arith.constant 0 : index
      %c0_8 = arith.constant 0 : index
      %17 = vector.load %arg15[%c0_7, %c0_8] : memref<8x32xf32, #tpu.memory_space<vmem>>, vector<8x32xf32>
      %c0_9 = arith.constant 0 : index
      %c0_10 = arith.constant 0 : index
      %18 = vector.load %arg12[%c0_9, %c0_10] : memref<8x32xf32, #tpu.memory_space<vmem>>, vector<8x32xf32>
      tpu.vector_store %arg12[%c0_9, %c0_10], %17 {strides = array<i32>} : memref<8x32xf32, #tpu.memory_space<vmem>>, vector<8x32xf32>,
      %c0_11 = arith.constant 0 : index
      %c0_12 = arith.constant 0 : index
      %19 = vector.load %arg8[%c0_11, %c0_12] : memref<32x32xf32, #tpu.memory_space<vmem>>, vector<32x32xf32>
      %cst = arith.constant dense<0.000000e+00> : vector<8x32xf32>
      %20 = tpu.matmul %15, %19, %cst {dimension_numbers = #tpu.dot_dimension_numbers<[1], [0], [0], [1], [0, 0, 1, 1], [], []>} : vector<8x32xf32>, vector<32x32xf32>, vector<8x32xf32> -> vector<8x32xf32>
      %c0_13 = arith.constant 0 : index
      %c0_14 = arith.constant 0 : index
      %21 = vector.load %arg9[%c0_13, %c0_14] : memref<1x32xf32, #tpu.memory_space<vmem>>, vector<1x32xf32>
      %22 = vector.broadcast %21 : vector<1x32xf32> to vector<8x32xf32>
      %23 = arith.addf %20, %22 : vector<8x32xf32>
      %24 = math.tanh %23 : vector<8x32xf32>
      %c0_15 = arith.constant 0 : index
      %c0_16 = arith.constant 0 : index
      %25 = vector.load %arg13[%c0_15, %c0_16] : memref<8x32xf32, #tpu.memory_space<vmem>>, vector<8x32xf32>
      tpu.vector_store %arg13[%c0_15, %c0_16], %24 {strides = array<i32>} : memref<8x32xf32, #tpu.memory_space<vmem>>, vector<8x32xf32>,
    } else {
    }
    return
  }
  func.func @transform_0(%arg0: i32, %arg1: i32, %arg2: memref<2xi32, #tpu.memory_space<smem>>) -> (i32, i32) {
    %c0_i32 = arith.constant 0 : i32
    %c0_i32_0 = arith.constant 0 : i32
    return %arg0, %c0_i32 : i32, i32
  }
  func.func @transform_1(%arg0: i32, %arg1: i32, %arg2: memref<2xi32, #tpu.memory_space<smem>>) -> (i32, i32, i32) {
    %c0_i32 = arith.constant 0 : i32
    %c0_i32_0 = arith.constant 0 : i32
    return %arg1, %arg0, %c0_i32 : i32, i32, i32
  }
  func.func @transform_2(%arg0: i32, %arg1: i32, %arg2: memref<2xi32, #tpu.memory_space<smem>>) -> (i32, i32) {
    %c0_i32 = arith.constant 0 : i32
    %c0_i32_0 = arith.constant 0 : i32
    %c0_i32_1 = arith.constant 0 : i32
    return %c0_i32, %c0_i32_0 : i32, i32
  }
  func.func @transform_3(%arg0: i32, %arg1: i32, %arg2: memref<2xi32, #tpu.memory_space<smem>>) -> (i32, i32) {
    %c0_i32 = arith.constant 0 : i32
    %c0_i32_0 = arith.constant 0 : i32
    %c0_i32_1 = arith.constant 0 : i32
    return %c0_i32, %c0_i32_0 : i32, i32
  }
  func.func @transform_4(%arg0: i32, %arg1: i32, %arg2: memref<2xi32, #tpu.memory_space<smem>>) -> (i32, i32) {
    %c0_i32 = arith.constant 0 : i32
    %c0_i32_0 = arith.constant 0 : i32
    %c0_i32_1 = arith.constant 0 : i32
    return %c0_i32, %c0_i32_0 : i32, i32
  }
  func.func @transform_5(%arg0: i32, %arg1: i32, %arg2: memref<2xi32, #tpu.memory_space<smem>>) -> (i32, i32) {
    %c0_i32 = arith.constant 0 : i32
    %c0_i32_0 = arith.constant 0 : i32
    %c0_i32_1 = arith.constant 0 : i32
    return %c0_i32, %c0_i32_0 : i32, i32
  }
  func.func @transform_6(%arg0: i32, %arg1: i32, %arg2: memref<2xi32, #tpu.memory_space<smem>>) -> (i32, i32) {
    %c0_i32 = arith.constant 0 : i32
    %c0_i32_0 = arith.constant 0 : i32
    %c0_i32_1 = arith.constant 0 : i32
    return %c0_i32, %c0_i32_0 : i32, i32
  }
  func.func @transform_7(%arg0: i32, %arg1: i32, %arg2: memref<2xi32, #tpu.memory_space<smem>>) -> (i32, i32, i32) {
    %c0_i32 = arith.constant 0 : i32
    %c0_i32_0 = arith.constant 0 : i32
    return %arg1, %arg0, %c0_i32 : i32, i32, i32
  }
  func.func @transform_8(%arg0: i32, %arg1: i32, %arg2: memref<2xi32, #tpu.memory_space<smem>>) -> (i32, i32) {
    %c0_i32 = arith.constant 0 : i32
    %c0_i32_0 = arith.constant 0 : i32
    return %arg0, %c0_i32 : i32, i32
  }
  func.func @transform_9(%arg0: i32, %arg1: i32, %arg2: memref<2xi32, #tpu.memory_space<smem>>) -> (i32, i32) {
    %c0_i32 = arith.constant 0 : i32
    %c0_i32_0 = arith.constant 0 : i32
    return %arg0, %c0_i32 : i32, i32
  }
  func.func @transform_10(%arg0: i32, %arg1: i32, %arg2: memref<2xi32, #tpu.memory_space<smem>>) -> (i32, i32) {
    %c0_i32 = arith.constant 0 : i32
    %c0_i32_0 = arith.constant 0 : i32
    return %arg0, %c0_i32 : i32, i32
  }
}

</mosaic_0001>

<llo_original>
// kernel: tpu_custom_call.1
$region0: #{tpu_custom_call.1}
  #allocation0 [shape = 'u32[]', space=smem, size = 0x4, offset = 0x4, fixed_abs, tag = 'smem constant byte address 0x4 - core index']
  #allocation1 [shape = 'u32[144,128]{1,0:T(1,128)}', space=vmem, size = 0x12000, scoped, tag = 'internal scratch']
  #allocation2 [shape = 'f32[8,32]{1,0:T(8,128)}', space=vmem, size = 0x1000, scoped, tag = 'scratch operand']
  #allocation3 [shape = 'f32[8,32]{1,0:T(8,128)}', space=vmem, size = 0x1000, scoped, tag = 'scratch operand']
  #allocation4 [shape = 's32[1]{0}', space=sflag, size = 0x4, scoped, tag = 'scoped memory for tpu_custom_call.1']
  #allocation5 [shape = 'u8[512]{0}', space=smem, size = 0x200, scoped, tag = 'prefetched SMEM operand 0']
  %s0 = inlined_call_operand.vmem [shape: s32[2], index: 0, kind: input, shape index: {}]
  %s1 = inlined_call_operand.vmem [shape: s32[16,1], index: 1, kind: input, shape index: {}]
  %s2 = inlined_call_operand.hbm [shape: f32[16,16,32], index: 2, kind: input, shape index: {}]
  %s3 = inlined_call_operand.hbm [shape: f32[32,128], index: 3, kind: input, shape index: {}]
  %s4 = inlined_call_operand.hbm [shape: f32[32,128], index: 4, kind: input, shape index: {}]
  %s5 = inlined_call_operand.vmem [shape: f32[1,128], index: 5, kind: input, shape index: {}]
  %s6 = inlined_call_operand.hbm [shape: f32[32,32], index: 6, kind: input, shape index: {}]
  %s7 = inlined_call_operand.vmem [shape: f32[1,32], index: 7, kind: input, shape index: {}]
  %s8 = inlined_call_operand.hbm [shape: f32[16,16,32], index: 8, kind: output, shape index: {0}]
  %s9 = inlined_call_operand.hbm [shape: f32[16,32], index: 9, kind: output, shape index: {1}]
  %s10 = inlined_call_operand.hbm [shape: f32[16,32], index: 10, kind: output, shape index: {2}]
  %s11 = inlined_call_operand.hbm [shape: f32[16,32], index: 11, kind: output, shape index: {3}]
  %12 = xla_tuple %s8, %s9, %s10, %s11
  %s13 = sld [smem:[#allocation0]]
  $region117: #{tpu_custom_call.1} parent=0
    _
  %s15 = ssub.s32 1, %s13
  %s16 = scalar_select 0, %s15, %s13
  %s17 = sshll.u32 %s0, 4
  %s18 = int_to_ptr.vmem [resolvable:$true] %s17
  %20 = dma.vmem_to_smem %s18, 16, [#allocation5], [#allocation4]
  %21 = dma.done [#allocation4], 16
  %22 = sfence
  $region1: #{tpu_custom_call.1} parent=0
    #allocation6 [shape = 'u8[65536]{0}', space=vmem, size = 0x10000, scoped, tag = 'input window, operand 2']
    #allocation7 [shape = 's32[2]{0}', space=sflag, size = 0x8, scoped, tag = 'scoped memory for tpu_custom_call.1']
    #allocation8 [shape = 's32[2]{0}', space=sflag, size = 0x8, scoped, tag = 'scoped memory for tpu_custom_call.1']
    #allocation9 [shape = 'u8[16384]{0}', space=vmem, size = 0x4000, scoped, tag = 'input window, operand 3, single buffered']
    #allocation10 [shape = 's32[1]{0}', space=sflag, size = 0x4, scoped, tag = 'scoped memory for tpu_custom_call.1']
    #allocation11 [shape = 'u8[16384]{0}', space=vmem, size = 0x4000, scoped, tag = 'input window, operand 4, single buffered']
    #allocation12 [shape = 'u8[16384]{0}', space=vmem, size = 0x4000, scoped, tag = 'input window, operand 6, single buffered']
    #allocation13 [shape = 's32[1]{0}', space=sflag, size = 0x4, scoped, tag = 'scoped memory for tpu_custom_call.1']
    #allocation14 [shape = 'u8[65536]{0}', space=vmem, size = 0x10000, scoped, tag = 'output window, operand 0']
    #allocation15 [shape = 'u8[8192]{0}', space=vmem, size = 0x2000, scoped, tag = 'output window, operand 1']
    #allocation16 [shape = 's32[2]{0}', space=sflag, size = 0x8, scoped, tag = 'scoped memory for tpu_custom_call.1']
    #allocation17 [shape = 'u8[8192]{0}', space=vmem, size = 0x2000, scoped, tag = 'output window, operand 2']
    #allocation18 [shape = 'u8[8192]{0}', space=vmem, size = 0x2000, scoped, tag = 'output window, operand 3']
    #allocation19 [shape = 's32[2]{0}', space=sflag, size = 0x8, scoped, tag = 'scoped memory for tpu_custom_call.1']
    %23 = vsyncpa [#allocation7], 0
    %s24 = scalar_lea.sflag [#allocation7], 1
    %25 = vsyncpa %s24, 0
    %26 = vsyncpa [#allocation10], 0
    %27 = vsyncpa [#allocation13], 0
    %28 = vsyncpa [#allocation8], 0
    %s29 = scalar_lea.sflag [#allocation8], 1
    %30 = vsyncpa %s29, 0
    %31 = vsyncpa [#allocation16], 0
    %s32 = scalar_lea.sflag [#allocation16], 1
    %33 = vsyncpa %s32, 0
    %34 = vsyncpa [#allocation19], 0
    %s35 = scalar_lea.sflag [#allocation19], 1
    %36 = vsyncpa %s35, 0
    loop: start=0, step=1, limit=6
    $region2: #{tpu_custom_call.1} parent=1 // loop_pre_header
      _
    $region3: #{tpu_custom_call.1} parent=1 // loop_header
      %s38 = sphi 0, %s42
      %p39 = scmp.ge.s32.totalorder %s38, 6
      %s45 = sphi 0, %s57
      %s46 = sphi 0, %s53
      %s47 = sphi 0, %s45
      %s48 = sphi 0, %s46
      %s49 = sphi 0, %s47
      %s50 = sphi 0, %s48
      %s60 = sphi 0, %s62
      %s63 = sphi 0, %s60
      %s64 = sphi 0, %s63
      %s80 = sphi 0, %s64
      %s88 = sphi 0, %s90
      %s91 = sphi 0, %s88
      %s92 = sphi 0, %s91
      %s108 = sphi 0, %s92
      %s112 = sphi 0, %s112
      %s114 = sphi 0, %s112
      %s115 = sphi 0, %s114
      %s129 = sphi 0, %s115
      %s133 = sphi 0, %s133
      %s135 = sphi 0, %s133
      %s136 = sphi 0, %s135
      %s150 = sphi 0, %s136
      %s154 = sphi 0, %s154
      %s156 = sphi 0, %s154
      %s157 = sphi 0, %s156
      %s171 = sphi 0, %s157
      %s175 = sphi 0, %s175
      %s177 = sphi 0, %s175
      %s178 = sphi 0, %s177
      %s192 = sphi 0, %s178
      %s196 = sphi 0, %s196
      %s198 = sphi 0, %s196
      %s199 = sphi 0, %s198
      %s213 = sphi 0, %s199
      %s221 = sphi 0, %s223
      %s224 = sphi 0, %s221
      %s225 = sphi 0, %s224
      %s241 = sphi 0, %s225
      %s247 = sphi 0, %s249
      %s250 = sphi 0, %s247
      %s251 = sphi 0, %s250
      %s267 = sphi 0, %s251
      %s273 = sphi 0, %s275
      %s276 = sphi 0, %s273
      %s277 = sphi 0, %s276
      %s293 = sphi 0, %s277
      %s299 = sphi 0, %s301
      %s302 = sphi 0, %s299
      %s303 = sphi 0, %s302
      %s319 = sphi 0, %s303
    $region4: #{tpu_custom_call.1} parent=1 // loop_header_branch
      %41 = sbr.rel (%p39) target = $region8
    $region5: #{tpu_custom_call.1} parent=1 // loop_body
      %s43 = ssub.s32 %s38, 1
      %s44 = ssub.s32 %s38, 2
      %s51 = sadd.s32 1, %s46
      %p52 = scmp.ge.s32.totalorder %s51, 2
      %s53 = scalar_select %p52, 0, %s51
      %s54 = sadd.s32 1, %s45
      %s55 = scalar_select %p52, %s54, %s45
      %p56 = scmp.ge.s32.totalorder %s55, 2
      %s57 = scalar_select %p56, 0, %s55
      %s58 = ssub.s32 %s45, %s57
      %p59 = scmp.eq.s32.totalorder %s58, 0
      %s61 = sadd.s32 %s60, 1
      %s62 = scalar_select %p59, %s60, %s61
      %p65 = pneg %p59
      %p66 = scmp.eq.s32.totalorder %s38, 3
      %p67 = por %p65, %p66
      %p68 = scmp.ne.s32.totalorder %s60, %s63
      %p69 = scmp.eq.s32.totalorder %s38, 0
      %p70 = por %p68, %p69
      %p71 = scmp.ne.s32.totalorder %s60, %s63
      %p72 = scmp.eq.s32.totalorder %s43, 3
      %p73 = por %p71, %p72
      %p74 = scmp.ne.s32.totalorder %s63, %s64
      %p75 = scmp.eq.s32.totalorder %s43, 0
      %p76 = por %p74, %p75
      %p77 = scmp.ne.s32.totalorder %s63, %s64
      %p78 = scmp.eq.s32.totalorder %s44, 3
      %p79 = por %p77, %p78
      %p81 = scmp.ne.s32.totalorder %s64, %s80
      %p82 = scmp.eq.s32.totalorder %s44, 0
      %p83 = por %p81, %p82
      %s84 = ssub.s32 %s46, %s53
      %s85 = ssub.s32 %s45, %s57
      %s86 = sor.u32 %s84, %s85
      %p87 = scmp.eq.s32.totalorder %s86, 0
      %s89 = sadd.s32 %s88, 1
      %s90 = scalar_select %p87, %s88, %s89
      %p93 = pneg %p87
      %p94 = scmp.eq.s32.totalorder %s38, 3
      %p95 = por %p93, %p94
      %p96 = scmp.ne.s32.totalorder %s88, %s91
      %p97 = scmp.eq.s32.totalorder %s38, 0
      %p98 = por %p96, %p97
      %p99 = scmp.ne.s32.totalorder %s88, %s91
      %p100 = scmp.eq.s32.totalorder %s43, 3
      %p101 = por %p99, %p100
      %p102 = scmp.ne.s32.totalorder %s91, %s92
      %p103 = scmp.eq.s32.totalorder %s43, 0
      %p104 = por %p102, %p103
      %p105 = scmp.ne.s32.totalorder %s91, %s92
      %p106 = scmp.eq.s32.totalorder %s44, 3
      %p107 = por %p105, %p106
      %p109 = scmp.ne.s32.totalorder %s92, %s108
      %p110 = scmp.eq.s32.totalorder %s44, 0
      %p111 = por %p109, %p110
      %s113 = sadd.s32 %s112, 1
      %p116 = scmp.eq.s32.totalorder %s38, 3
      %p117 = scmp.ne.s32.totalorder %s112, %s114
      %p118 = scmp.eq.s32.totalorder %s38, 0
      %p119 = por %p117, %p118
      %p120 = scmp.ne.s32.totalorder %s112, %s114
      %p121 = scmp.eq.s32.totalorder %s43, 3
      %p122 = por %p120, %p121
      %p123 = scmp.ne.s32.totalorder %s114, %s115
      %p124 = scmp.eq.s32.totalorder %s43, 0
      %p125 = por %p123, %p124
      %p126 = scmp.ne.s32.totalorder %s114, %s115
      %p127 = scmp.eq.s32.totalorder %s44, 3
      %p128 = por %p126, %p127
      %p130 = scmp.ne.s32.totalorder %s115, %s129
      %p131 = scmp.eq.s32.totalorder %s44, 0
      %p132 = por %p130, %p131
      %s134 = sadd.s32 %s133, 1
      %p137 = scmp.eq.s32.totalorder %s38, 3
      %p138 = scmp.ne.s32.totalorder %s133, %s135
      %p139 = scmp.eq.s32.totalorder %s38, 0
      %p140 = por %p138, %p139
      %p141 = scmp.ne.s32.totalorder %s133, %s135
      %p142 = scmp.eq.s32.totalorder %s43, 3
      %p143 = por %p141, %p142
      %p144 = scmp.ne.s32.totalorder %s135, %s136
      %p145 = scmp.eq.s32.totalorder %s43, 0
      %p146 = por %p144, %p145
      %p147 = scmp.ne.s32.totalorder %s135, %s136
      %p148 = scmp.eq.s32.totalorder %s44, 3
      %p149 = por %p147, %p148
      %p151 = scmp.ne.s32.totalorder %s136, %s150
      %p152 = scmp.eq.s32.totalorder %s44, 0
      %p153 = por %p151, %p152
      %s155 = sadd.s32 %s154, 1
      %p158 = scmp.eq.s32.totalorder %s38, 3
      %p159 = scmp.ne.s32.totalorder %s154, %s156
      %p160 = scmp.eq.s32.totalorder %s38, 0
      %p161 = por %p159, %p160
      %p162 = scmp.ne.s32.totalorder %s154, %s156
      %p163 = scmp.eq.s32.totalorder %s43, 3
      %p164 = por %p162, %p163
      %p165 = scmp.ne.s32.totalorder %s156, %s157
      %p166 = scmp.eq.s32.totalorder %s43, 0
      %p167 = por %p165, %p166
      %p168 = scmp.ne.s32.totalorder %s156, %s157
      %p169 = scmp.eq.s32.totalorder %s44, 3
      %p170 = por %p168, %p169
      %p172 = scmp.ne.s32.totalorder %s157, %s171
      %p173 = scmp.eq.s32.totalorder %s44, 0
      %p174 = por %p172, %p173
      %s176 = sadd.s32 %s175, 1
      %p179 = scmp.eq.s32.totalorder %s38, 3
      %p180 = scmp.ne.s32.totalorder %s175, %s177
      %p181 = scmp.eq.s32.totalorder %s38, 0
      %p182 = por %p180, %p181
      %p183 = scmp.ne.s32.totalorder %s175, %s177
      %p184 = scmp.eq.s32.totalorder %s43, 3
      %p185 = por %p183, %p184
      %p186 = scmp.ne.s32.totalorder %s177, %s178
      %p187 = scmp.eq.s32.totalorder %s43, 0
      %p188 = por %p186, %p187
      %p189 = scmp.ne.s32.totalorder %s177, %s178
      %p190 = scmp.eq.s32.totalorder %s44, 3
      %p191 = por %p189, %p190
      %p193 = scmp.ne.s32.totalorder %s178, %s192
      %p194 = scmp.eq.s32.totalorder %s44, 0
      %p195 = por %p193, %p194
      %s197 = sadd.s32 %s196, 1
      %p200 = scmp.eq.s32.totalorder %s38, 3
      %p201 = scmp.ne.s32.totalorder %s196, %s198
      %p202 = scmp.eq.s32.totalorder %s38, 0
      %p203 = por %p201, %p202
      %p204 = scmp.ne.s32.totalorder %s196, %s198
      %p205 = scmp.eq.s32.totalorder %s43, 3
      %p206 = por %p204, %p205
      %p207 = scmp.ne.s32.totalorder %s198, %s199
      %p208 = scmp.eq.s32.totalorder %s43, 0
      %p209 = por %p207, %p208
      %p210 = scmp.ne.s32.totalorder %s198, %s199
      %p211 = scmp.eq.s32.totalorder %s44, 3
      %p212 = por %p210, %p211
      %p214 = scmp.ne.s32.totalorder %s199, %s213
      %p215 = scmp.eq.s32.totalorder %s44, 0
      %p216 = por %p214, %p215
      %s217 = ssub.s32 %s46, %s53
      %s218 = ssub.s32 %s45, %s57
      %s219 = sor.u32 %s217, %s218
      %p220 = scmp.eq.s32.totalorder %s219, 0
      %s222 = sadd.s32 %s221, 1
      %s223 = scalar_select %p220, %s221, %s222
      %p226 = pneg %p220
      %p227 = scmp.eq.s32.totalorder %s38, 3
      %p228 = por %p226, %p227
      %p229 = scmp.ne.s32.totalorder %s221, %s224
      %p230 = scmp.eq.s32.totalorder %s38, 0
      %p231 = por %p229, %p230
      %p232 = scmp.ne.s32.totalorder %s221, %s224
      %p233 = scmp.eq.s32.totalorder %s43, 3
      %p234 = por %p232, %p233
      %p235 = scmp.ne.s32.totalorder %s224, %s225
      %p236 = scmp.eq.s32.totalorder %s43, 0
      %p237 = por %p235, %p236
      %p238 = scmp.ne.s32.totalorder %s224, %s225
      %p239 = scmp.eq.s32.totalorder %s44, 3
      %p240 = por %p238, %p239
      %p242 = scmp.ne.s32.totalorder %s225, %s241
      %p243 = scmp.eq.s32.totalorder %s44, 0
      %p244 = por %p242, %p243
      %s245 = ssub.s32 %s45, %s57
      %p246 = scmp.eq.s32.totalorder %s245, 0
      %s248 = sadd.s32 %s247, 1
      %s249 = scalar_select %p246, %s247, %s248
      %p252 = pneg %p246
      %p253 = scmp.eq.s32.totalorder %s38, 3
      %p254 = por %p252, %p253
      %p255 = scmp.ne.s32.totalorder %s247, %s250
      %p256 = scmp.eq.s32.totalorder %s38, 0
      %p257 = por %p255, %p256
      %p258 = scmp.ne.s32.totalorder %s247, %s250
      %p259 = scmp.eq.s32.totalorder %s43, 3
      %p260 = por %p258, %p259
      %p261 = scmp.ne.s32.totalorder %s250, %s251
      %p262 = scmp.eq.s32.totalorder %s43, 0
      %p263 = por %p261, %p262
      %p264 = scmp.ne.s32.totalorder %s250, %s251
      %p265 = scmp.eq.s32.totalorder %s44, 3
      %p266 = por %p264, %p265
      %p268 = scmp.ne.s32.totalorder %s251, %s267
      %p269 = scmp.eq.s32.totalorder %s44, 0
      %p270 = por %p268, %p269
      %s271 = ssub.s32 %s45, %s57
      %p272 = scmp.eq.s32.totalorder %s271, 0
      %s274 = sadd.s32 %s273, 1
      %s275 = scalar_select %p272, %s273, %s274
      %p278 = pneg %p272
      %p279 = scmp.eq.s32.totalorder %s38, 3
      %p280 = por %p278, %p279
      %p281 = scmp.ne.s32.totalorder %s273, %s276
      %p282 = scmp.eq.s32.totalorder %s38, 0
      %p283 = por %p281, %p282
      %p284 = scmp.ne.s32.totalorder %s273, %s276
      %p285 = scmp.eq.s32.totalorder %s43, 3
      %p286 = por %p284, %p285
      %p287 = scmp.ne.s32.totalorder %s276, %s277
      %p288 = scmp.eq.s32.totalorder %s43, 0
      %p289 = por %p287, %p288
      %p290 = scmp.ne.s32.totalorder %s276, %s277
      %p291 = scmp.eq.s32.totalorder %s44, 3
      %p292 = por %p290, %p291
      %p294 = scmp.ne.s32.totalorder %s277, %s293
      %p295 = scmp.eq.s32.totalorder %s44, 0
      %p296 = por %p294, %p295
      %s297 = ssub.s32 %s45, %s57
      %p298 = scmp.eq.s32.totalorder %s297, 0
      %s300 = sadd.s32 %s299, 1
      %s301 = scalar_select %p298, %s299, %s300
      %p304 = pneg %p298
      %p305 = scmp.eq.s32.totalorder %s38, 3
      %p306 = por %p304, %p305
      %p307 = scmp.ne.s32.totalorder %s299, %s302
      %p308 = scmp.eq.s32.totalorder %s38, 0
      %p309 = por %p307, %p308
      %p310 = scmp.ne.s32.totalorder %s299, %s302
      %p311 = scmp.eq.s32.totalorder %s43, 3
      %p312 = por %p310, %p311
      %p313 = scmp.ne.s32.totalorder %s302, %s303
      %p314 = scmp.eq.s32.totalorder %s43, 0
      %p315 = por %p313, %p314
      %p316 = scmp.ne.s32.totalorder %s302, %s303
      %p317 = scmp.eq.s32.totalorder %s44, 3
      %p318 = por %p316, %p317
      %p320 = scmp.ne.s32.totalorder %s303, %s319
      %p321 = scmp.eq.s32.totalorder %s44, 0
      %p322 = por %p320, %p321
      %p323 = scmp.le.s32.totalorder 1, %s38
      %p324 = scmp.lt.s32.totalorder %s38, 5
      %p325 = pnand %p323, %p324
      %p326 = pneg %p325
      // Predicated region
      $region9: #{tpu_custom_call.1} parent=5 // pred_check
        _
      $region10: #{tpu_custom_call.1} parent=5 // pred_check_branch
        %328 = sbr.rel (%p325) target = $region12
      $region11: #{tpu_custom_call.1} parent=5 // pred_region
        %s329 = ssub.s32 %s38, 1
        // Predicated region
        $region13: #{tpu_custom_call.1} parent=11 // pred_check
          %p330 = pneg %p125
        $region14: #{tpu_custom_call.1} parent=11 // pred_check_branch
          %332 = sbr.rel (%p330) target = $region16
        $region15: #{tpu_custom_call.1} parent=11 // pred_region
          %s334 = ssub.s32 512, 512
          %335 = vsyncadd [#allocation10], %s334
          %s336 = sshll.u32 [#allocation9], 4
          %s337 = int_to_ptr.vmem [resolvable:$true] %s336
          %342 = dma.hbm_to_vmem [thread:$0]  %s3, 512, %s337, [#allocation10], 128, 128, 8
        $region16: #{tpu_custom_call.1} parent=11 // pred_fallthru
          _
        // Predicated region
        $region17: #{tpu_custom_call.1} parent=11 // pred_check
          %p343 = pneg %p146
        $region18: #{tpu_custom_call.1} parent=11 // pred_check_branch
          %345 = sbr.rel (%p343) target = $region20
        $region19: #{tpu_custom_call.1} parent=11 // pred_region
          %s347 = ssub.s32 512, 512
          %348 = vsyncadd [#allocation10], %s347
          %s349 = sshll.u32 [#allocation11], 4
          %s350 = int_to_ptr.vmem [resolvable:$true] %s349
          %355 = dma.hbm_to_vmem [thread:$0]  %s4, 512, %s350, [#allocation10], 128, 128, 8
        $region20: #{tpu_custom_call.1} parent=11 // pred_fallthru
          _
        // Predicated region
        $region21: #{tpu_custom_call.1} parent=11 // pred_check
          %p356 = pneg %p167
        $region22: #{tpu_custom_call.1} parent=11 // pred_check_branch
          %358 = sbr.rel (%p356) target = $region24
        $region23: #{tpu_custom_call.1} parent=11 // pred_region
          _
        $region24: #{tpu_custom_call.1} parent=11 // pred_fallthru
          _
        // Predicated region
        $region25: #{tpu_custom_call.1} parent=11 // pred_check
          %p359 = pneg %p188
        $region26: #{tpu_custom_call.1} parent=11 // pred_check_branch
          %361 = sbr.rel (%p359) target = $region28
        $region27: #{tpu_custom_call.1} parent=11 // pred_region
          %s363 = ssub.s32 512, 512
          %364 = vsyncadd [#allocation13], %s363
          %s365 = sshll.u32 [#allocation12], 4
          %s366 = int_to_ptr.vmem [resolvable:$true] %s365
          %371 = dma.hbm_to_vmem [thread:$0]  %s6, 512, %s366, [#allocation13], 128, 128, 8
        $region28: #{tpu_custom_call.1} parent=11 // pred_fallthru
          _
        // Predicated region
        $region29: #{tpu_custom_call.1} parent=11 // pred_check
          %p372 = pneg %p209
        $region30: #{tpu_custom_call.1} parent=11 // pred_check_branch
          %374 = sbr.rel (%p372) target = $region32
        $region31: #{tpu_custom_call.1} parent=11 // pred_region
          _
        $region32: #{tpu_custom_call.1} parent=11 // pred_fallthru
          _
      $region12: #{tpu_custom_call.1} parent=5 // pred_fallthru
        _
      %p375 = scmp.lt.s32.totalorder %s38, 4
      // Predicated region
      $region33: #{tpu_custom_call.1} parent=5 // pred_check
        %p376 = pneg %p375
      $region34: #{tpu_custom_call.1} parent=5 // pred_check_branch
        %378 = sbr.rel (%p376) target = $region36
      $region35: #{tpu_custom_call.1} parent=5 // pred_region
        // Predicated region
        $region37: #{tpu_custom_call.1} parent=35 // pred_check
          %p379 = pneg %p70
        $region38: #{tpu_custom_call.1} parent=35 // pred_check_branch
          %381 = sbr.rel (%p379) target = $region40
        $region39: #{tpu_custom_call.1} parent=35 // pred_region
          %p382 = scmp.lt.s32.totalorder %s45, 1
          %s383 = scalar_select %p382, %s45, 1
          %s384 = smul.addr %s383, 8
          %s385 = scalar_lea.vmem %s1, %s384
        $region40: #{tpu_custom_call.1} parent=35 // pred_fallthru
          _
        // Predicated region
        $region41: #{tpu_custom_call.1} parent=35 // pred_check
          %p386 = pneg %p98
        $region42: #{tpu_custom_call.1} parent=35 // pred_check_branch
          %388 = sbr.rel (%p386) target = $region44
        $region43: #{tpu_custom_call.1} parent=35 // pred_region
          %s389 = sand.u32 %s88, 1
          %s390 = scalar_lea.sflag [#allocation7], %s389
          %s391 = sand.u32 %s88, 1
          %s392 = smul.addr %s391, 64
          %s393 = scalar_lea.vmem [#allocation6], %s392
          %s394 = smul.u32 8, %s46
          %s396 = ssub.s32 1024, 1024
          %397 = vsyncadd %s390, %s396
          %s398 = smul.addr %s394, 2
          %s399 = sadd.s32 %s45, %s398
          %s400 = smul.addr %s399, 128
          %s401 = scalar_lea.hbm %s2, %s400
          %s402 = sshll.u32 %s393, 4
          %s403 = int_to_ptr.vmem [resolvable:$true] %s402
          %408 = dma.hbm_to_vmem [thread:$0]  %s401, 1024, %s403, %s390, 256, 128, 8
        $region44: #{tpu_custom_call.1} parent=35 // pred_fallthru
          _
      $region36: #{tpu_custom_call.1} parent=5 // pred_fallthru
        _
      %p409 = scmp.le.s32.totalorder 1, %s38
      %p410 = scmp.lt.s32.totalorder %s38, 5
      %p411 = pnand %p409, %p410
      %p412 = pneg %p411
      // Predicated region
      $region45: #{tpu_custom_call.1} parent=5 // pred_check
        _
      $region46: #{tpu_custom_call.1} parent=5 // pred_check_branch
        %414 = sbr.rel (%p411) target = $region48
      $region47: #{tpu_custom_call.1} parent=5 // pred_region
        %s415 = ssub.s32 %s38, 1
        %s416 = sand.u32 %s91, 1
        %s417 = scalar_lea.sflag [#allocation7], %s416
        %s418 = sand.u32 %s91, 1
        %s419 = smul.addr %s418, 64
        %s420 = scalar_lea.vmem [#allocation6], %s419
        // Predicated region
        $region49: #{tpu_custom_call.1} parent=47 // pred_check
          %p421 = pneg %p104
        $region50: #{tpu_custom_call.1} parent=47 // pred_check_branch
          %423 = sbr.rel (%p421) target = $region52
        $region51: #{tpu_custom_call.1} parent=47 // pred_region
          %424 = dma.done %s417, 1024
        $region52: #{tpu_custom_call.1} parent=47 // pred_fallthru
          _
        // Predicated region
        $region53: #{tpu_custom_call.1} parent=47 // pred_check
          %p425 = pneg %p125
        $region54: #{tpu_custom_call.1} parent=47 // pred_check_branch
          %427 = sbr.rel (%p425) target = $region56
        $region55: #{tpu_custom_call.1} parent=47 // pred_region
          %428 = dma.done [#allocation10], 512
        $region56: #{tpu_custom_call.1} parent=47 // pred_fallthru
          _
        // Predicated region
        $region57: #{tpu_custom_call.1} parent=47 // pred_check
          %p429 = pneg %p146
        $region58: #{tpu_custom_call.1} parent=47 // pred_check_branch
          %431 = sbr.rel (%p429) target = $region60
        $region59: #{tpu_custom_call.1} parent=47 // pred_region
          %432 = dma.done [#allocation10], 512
        $region60: #{tpu_custom_call.1} parent=47 // pred_fallthru
          _
        // Predicated region
        $region61: #{tpu_custom_call.1} parent=47 // pred_check
          %p433 = pneg %p188
        $region62: #{tpu_custom_call.1} parent=47 // pred_check_branch
          %435 = sbr.rel (%p433) target = $region64
        $region63: #{tpu_custom_call.1} parent=47 // pred_region
          %436 = dma.done [#allocation13], 512
        $region64: #{tpu_custom_call.1} parent=47 // pred_fallthru
          _
        %p437 = scmp.lt.s32.totalorder %s47, 1
        %s438 = scalar_select %p437, %s47, 1
        %s439 = smul.addr %s438, 8
        %s440 = scalar_lea.vmem %s1, %s439
        %p441 = pneg %p76
        %p442 = pneg %p73
        %s443 = sand.u32 %s91, 1
        %s444 = scalar_lea.sflag [#allocation7], %s443
        %s445 = sand.u32 %s91, 1
        %s446 = smul.addr %s445, 64
        %s447 = scalar_lea.vmem [#allocation6], %s446
        %p448 = pneg %p104
        %p449 = pneg %p101
        %p450 = pneg %p125
        %p451 = pneg %p122
        %p452 = pneg %p146
        %p453 = pneg %p143
        %p454 = pneg %p167
        %p455 = pneg %p164
        %p456 = pneg %p188
        %p457 = pneg %p185
        %p458 = pneg %p209
        %p459 = pneg %p206
        %p460 = pneg %p237
        %p461 = pneg %p234
        %s462 = sand.u32 %s224, 1
        %s463 = scalar_lea.sflag [#allocation8], %s462
        %s464 = sand.u32 %s224, 1
        %s465 = smul.addr %s464, 64
        %s466 = scalar_lea.vmem [#allocation14], %s465
        %p467 = pneg %p263
        %p468 = pneg %p260
        %s469 = sand.u32 %s43, 1
        %s470 = scalar_lea.sflag [#allocation16], %s469
        %s471 = sand.u32 %s250, 1
        %s472 = smul.addr %s471, 8
        %s473 = scalar_lea.vmem [#allocation15], %s472
        %p474 = pneg %p289
        %p475 = pneg %p286
        %s476 = sand.u32 %s43, 1
        %s477 = scalar_lea.sflag [#allocation16], %s476
        %s478 = sand.u32 %s276, 1
        %s479 = smul.addr %s478, 8
        %s480 = scalar_lea.vmem [#allocation17], %s479
        %p481 = pneg %p315
        %p482 = pneg %p312
        %s483 = sand.u32 %s302, 1
        %s484 = scalar_lea.sflag [#allocation19], %s483
        %s485 = sand.u32 %s302, 1
        %s486 = smul.addr %s485, 8
        %s487 = scalar_lea.vmem [#allocation18], %s486
        %p488 = scmp.lt.s32.totalorder %s47, 1
        %s489 = scalar_select %p488, %s47, 1
        %s490 = smul.addr %s489, 8
        %s491 = scalar_lea.vmem %s1, %s490
        %s492 = smul.u32 8, %s48
        %s493 = smul.u32 8, %s48
        %p494 = scmp.eq.s32.totalorder %s48, 0
        // Predicated region
        $region65: #{tpu_custom_call.1} parent=47 // pred_check
          %p495 = pneg %p494
        $region66: #{tpu_custom_call.1} parent=47 // pred_check_branch
          %497 = sbr.rel (%p495) target = $region68
        $region67: #{tpu_custom_call.1} parent=47 // pred_region
          %vm498 = vcmask 261120
          %499 = vst.msk [vmem:[#allocation2] sm:$0xff] %vm498, 0.0
          %500 = vst.msk [vmem:[#allocation3] sm:$0xff] %vm498, 0.0
        $region68: #{tpu_custom_call.1} parent=47 // pred_fallthru
          _
        %s501 = smul.u32 %s48, 8
        %s502 = sld [smem:[#allocation5 + %s47]]
        %p503 = scmp.lt.s32.totalorder %s501, %s502
        // Predicated region
        $region69: #{tpu_custom_call.1} parent=47 // pred_check
          %p504 = pneg %p503
        $region70: #{tpu_custom_call.1} parent=47 // pred_check_branch
          %506 = sbr.rel (%p504) target = $region72
        $region71: #{tpu_custom_call.1} parent=47 // pred_region
          %v507 = vld [vmem:[%s491] sm:$0xff]
          %v508 = vld [vmem:[#allocation9] sm:$0xff]
          %v509 = vld [vmem:[#allocation9 + $0x8] sm:$0xff]
          %v510 = vld [vmem:[#allocation9 + $0x10] sm:$0xff]
          %v511 = vld [vmem:[#allocation9 + $0x18] sm:$0xff]
          %v512 = vld [vmem:[#allocation11] sm:$0xff]
          %v513 = vld [vmem:[#allocation11 + $0x8] sm:$0xff]
          %v514 = vld [vmem:[#allocation11 + $0x10] sm:$0xff]
          %v515 = vld [vmem:[#allocation11 + $0x18] sm:$0xff]
          %v516 = vld [vmem:[%s5] sm:$0x1]
          %v517 = vld [vmem:[%s420] sm:$0xff]
          %v518 = vld [vmem:[%s420 + $0x8] sm:$0xff]
          %v519 = vld [vmem:[%s420 + $0x10] sm:$0xff]
          %v520 = vld [vmem:[%s420 + $0x18] sm:$0xff]
          %v521 = vld [vmem:[%s420 + $0x20] sm:$0xff]
          %v522 = vld [vmem:[%s420 + $0x28] sm:$0xff]
          %v523 = vld [vmem:[%s420 + $0x30] sm:$0xff]
          %v524 = vld [vmem:[%s420 + $0x38] sm:$0xff]
          %v526 = vlaneseq
          %v527 = vshrl.u32 %v526, 7
          %v528 = vsub.s32 0, %v527
          %v529 = vrot.slane %v516, %v528
          %vm531 = vcmask 261120
          %v533 = vsel %vm531, %v517, 0
          %v536 = vsel %vm531, %v518, 0
          %v539 = vsel %vm531, %v519, 0
          %v542 = vsel %vm531, %v520, 0
          %v545 = vsel %vm531, %v521, 0
          %v548 = vsel %vm531, %v522, 0
          %v551 = vsel %vm531, %v523, 0
          %v554 = vsel %vm531, %v524, 0
          %556 = vmatprep.subr.mxu0 0.0
          %557 = vmatpush1.msra.mxu0 0.0
          %558 = vmatprep.subr.mxu0 0.0
          %559 = vmatpush1.msra.mxu0 0.0
          %560 = vmatprep.subr.mxu0 0.0
          %561 = vmatpush1.msra.mxu0 0.0
          %562 = vmatprep.subr.mxu0 0.0
          %563 = vmatpush1.msra.mxu0 0.0
          %564 = vmatprep.subr.mxu0 0.0
          %565 = vmatpush1.msra.mxu0 0.0
          %566 = vmatprep.subr.mxu0 0.0
          %567 = vmatpush1.msra.mxu0 0.0
          %568 = vmatprep.subr.mxu0 0.0
          %569 = vmatpush1.msra.mxu0 0.0
          %570 = vmatprep.subr.mxu0 0.0
          %571 = vmatpush1.msra.mxu0 0.0
          %572 = vmatprep.subr.mxu0 0.0
          %573 = vmatpush1.msra.mxu0 0.0
          %574 = vmatprep.subr.mxu0 0.0
          %575 = vmatpush1.msra.mxu0 0.0
          %576 = vmatprep.subr.mxu0 0.0
          %577 = vmatpush1.msra.mxu0 0.0
          %578 = vmatprep.subr.mxu0 0.0
          %579 = vmatpush1.msra.mxu0 0.0
          %580 = vmatprep.subr.mxu0 0.0
          %581 = vmatpush1.msra.mxu0 %v511
          %582 = vmatprep.subr.mxu0 0.0
          %583 = vmatpush1.msra.mxu0 %v510
          %584 = vmatprep.subr.mxu0 0.0
          %585 = vmatpush1.msra.mxu0 %v509
          %586 = vmatprep.subr.mxu0 0.0
          %587 = vmatpush1.msra.mxu0 %v508
          %588 = vmatprep.subr.mxu0 0.0
          %589 = vmatpush2.msra.mxu0 0.0
          %590 = vmatprep.subr.mxu0 0.0
          %591 = vmatpush2.msra.mxu0 0.0
          %592 = vmatprep.subr.mxu0 0.0
          %593 = vmatpush2.msra.mxu0 0.0
          %594 = vmatprep.subr.mxu0 0.0
          %595 = vmatpush2.msra.mxu0 0.0
          %596 = vmatprep.subr.mxu0 0.0
          %597 = vmatpush2.msra.mxu0 0.0
          %598 = vmatprep.subr.mxu0 0.0
          %599 = vmatpush2.msra.mxu0 0.0
          %600 = vmatprep.subr.mxu0 0.0
          %601 = vmatpush2.msra.mxu0 0.0
          %602 = vmatprep.subr.mxu0 0.0
          %603 = vmatpush2.msra.mxu0 0.0
          %604 = vmatprep.subr.mxu0 0.0
          %605 = vmatpush2.msra.mxu0 0.0
          %606 = vmatprep.subr.mxu0 0.0
          %607 = vmatpush2.msra.mxu0 0.0
          %608 = vmatprep.subr.mxu0 0.0
          %609 = vmatpush2.msra.mxu0 0.0
          %610 = vmatprep.subr.mxu0 0.0
          %611 = vmatpush2.msra.mxu0 0.0
          %612 = vmatprep.subr.mxu0 0.0
          %613 = vmatpush2.msra.mxu0 0.0
          %614 = vmatprep.subr.mxu0 0.0
          %615 = vmatpush2.msra.mxu0 0.0
          %616 = vmatprep.subr.mxu0 0.0
          %617 = vmatpush2.msra.mxu0 0.0
          %618 = vmatprep.subr.mxu0 0.0
          %619 = vmatpush2.msra.mxu0 0.0
          %620 = vmatprep.mubr.f32.mxu0 0.0
          %621 = vmatmul.mubr.f32.gmra.mxu0 %v533
          %v622 = vpop.f32.mrf.mxu0
          %v623 = vadd.f32 %v529, %v622
          %v624 = vpop.f32.mrf.mxu0
          %625 = vmatprep.mubr.f32.mxu0 0.0
          %626 = vmatmul.mubr.f32.gmra.mxu0 %v536
          %v627 = vpop.f32.mrf.mxu0
          %v628 = vadd.f32 %v529, %v627
          %v629 = vpop.f32.mrf.mxu0
          %630 = vmatprep.mubr.f32.mxu0 0.0
          %631 = vmatmul.mubr.f32.gmra.mxu0 %v539
          %v632 = vpop.f32.mrf.mxu0
          %v633 = vadd.f32 %v529, %v632
          %v634 = vpop.f32.mrf.mxu0
          %635 = vmatprep.mubr.f32.mxu0 0.0
          %636 = vmatmul.mubr.f32.gmra.mxu0 %v542
          %v637 = vpop.f32.mrf.mxu0
          %v638 = vadd.f32 %v529, %v637
          %v639 = vpop.f32.mrf.mxu0
          %640 = vmatprep.mubr.f32.mxu0 0.0
          %641 = vmatmul.mubr.f32.gmra.mxu0 %v545
          %v642 = vpop.f32.mrf.mxu0
          %v643 = vadd.f32 %v529, %v642
          %v644 = vpop.f32.mrf.mxu0
          %645 = vmatprep.mubr.f32.mxu0 0.0
          %646 = vmatmul.mubr.f32.gmra.mxu0 %v548
          %v647 = vpop.f32.mrf.mxu0
          %v648 = vadd.f32 %v529, %v647
          %v649 = vpop.f32.mrf.mxu0
          %650 = vmatprep.mubr.f32.mxu0 0.0
          %651 = vmatmul.mubr.f32.gmra.mxu0 %v551
          %v652 = vpop.f32.mrf.mxu0
          %v653 = vadd.f32 %v529, %v652
          %v654 = vpop.f32.mrf.mxu0
          %655 = vmatprep.mubr.f32.mxu0 0.0
          %656 = vmatmul.mubr.f32.gmra.mxu0 %v554
          %v657 = vpop.f32.mrf.mxu0
          %v658 = vadd.f32 %v529, %v657
          %v659 = vpop.f32.mrf.mxu0
          %660 = vdwg.mxu0
          %v661 = vld [vmem:[#allocation2] sm:$0xff]
          %v662 = vld [vmem:[#allocation3] sm:$0xff]
          %v664 = vsel %vm531, %v661, 0
          %666 = vmatprep.subr.mxu0 0.0
          %667 = vmatpush1.msra.mxu0 0.0
          %668 = vmatprep.subr.mxu0 0.0
          %669 = vmatpush1.msra.mxu0 0.0
          %670 = vmatprep.subr.mxu0 0.0
          %671 = vmatpush1.msra.mxu0 0.0
          %672 = vmatprep.subr.mxu0 0.0
          %673 = vmatpush1.msra.mxu0 0.0
          %674 = vmatprep.subr.mxu0 0.0
          %675 = vmatpush1.msra.mxu0 0.0
          %676 = vmatprep.subr.mxu0 0.0
          %677 = vmatpush1.msra.mxu0 0.0
          %678 = vmatprep.subr.mxu0 0.0
          %679 = vmatpush1.msra.mxu0 0.0
          %680 = vmatprep.subr.mxu0 0.0
          %681 = vmatpush1.msra.mxu0 0.0
          %682 = vmatprep.subr.mxu0 0.0
          %683 = vmatpush1.msra.mxu0 0.0
          %684 = vmatprep.subr.mxu0 0.0
          %685 = vmatpush1.msra.mxu0 0.0
          %686 = vmatprep.subr.mxu0 0.0
          %687 = vmatpush1.msra.mxu0 0.0
          %688 = vmatprep.subr.mxu0 0.0
          %689 = vmatpush1.msra.mxu0 0.0
          %690 = vmatprep.subr.mxu0 0.0
          %691 = vmatpush1.msra.mxu0 %v515
          %692 = vmatprep.subr.mxu0 0.0
          %693 = vmatpush1.msra.mxu0 %v514
          %694 = vmatprep.subr.mxu0 0.0
          %695 = vmatpush1.msra.mxu0 %v513
          %696 = vmatprep.subr.mxu0 0.0
          %697 = vmatpush1.msra.mxu0 %v512
          %698 = vmatprep.subr.mxu0 0.0
          %699 = vmatpush2.msra.mxu0 0.0
          %700 = vmatprep.subr.mxu0 0.0
          %701 = vmatpush2.msra.mxu0 0.0
          %702 = vmatprep.subr.mxu0 0.0
          %703 = vmatpush2.msra.mxu0 0.0
          %704 = vmatprep.subr.mxu0 0.0
          %705 = vmatpush2.msra.mxu0 0.0
          %706 = vmatprep.subr.mxu0 0.0
          %707 = vmatpush2.msra.mxu0 0.0
          %708 = vmatprep.subr.mxu0 0.0
          %709 = vmatpush2.msra.mxu0 0.0
          %710 = vmatprep.subr.mxu0 0.0
          %711 = vmatpush2.msra.mxu0 0.0
          %712 = vmatprep.subr.mxu0 0.0
          %713 = vmatpush2.msra.mxu0 0.0
          %714 = vmatprep.subr.mxu0 0.0
          %715 = vmatpush2.msra.mxu0 0.0
          %716 = vmatprep.subr.mxu0 0.0
          %717 = vmatpush2.msra.mxu0 0.0
          %718 = vmatprep.subr.mxu0 0.0
          %719 = vmatpush2.msra.mxu0 0.0
          %720 = vmatprep.subr.mxu0 0.0
          %721 = vmatpush2.msra.mxu0 0.0
          %722 = vmatprep.subr.mxu0 0.0
          %723 = vmatpush2.msra.mxu0 0.0
          %724 = vmatprep.subr.mxu0 0.0
          %725 = vmatpush2.msra.mxu0 0.0
          %726 = vmatprep.subr.mxu0 0.0
          %727 = vmatpush2.msra.mxu0 0.0
          %728 = vmatprep.subr.mxu0 0.0
          %729 = vmatpush2.msra.mxu0 0.0
          %730 = vmatprep.mubr.f32.mxu0 0.0
          %731 = vmatmul.mubr.f32.gmra.mxu0 %v664
          %v732 = vpop.f32.mrf.mxu0
          %v733 = vadd.f32 0.0, %v732
          %v734 = vpop.f32.mrf.mxu0
          %735 = vdwg.mxu0
          %v736 = vadd.f32 %v623, %v733
          %v737 = vxor.u32 %v736, 2147483648
          %v738 = vmul.f32 %v737, 1.442695
          %v739 = vpow.pop %v738
          %v740 = vadd.f32 %v739, 1.0
          %v741 = vrcp.pop %v740
          %v742 = vmul.f32 1.0, %v741
          %v743 = vtanh.pop %v736
          %745 = vrot.lane.b32.xlu0 %v662, 32
          %v746 = vpop.permute.xlu0 %745
          %v748 = vmul.f32 %v742, %v746
          %750 = vrot.lane.b32.xlu0 %v743, 32
          %v751 = vpop.permute.xlu0 %750
          %v753 = vmul.f32 %v742, %v751
          %755 = vrot.lane.b32.xlu0 %v753, 32
          %v756 = vpop.permute.xlu0 %755
          %v758 = vadd.f32 %v748, %v756
          %v759 = vtanh.pop %v758
          %761 = vrot.lane.b32.xlu0 %v759, 32
          %v762 = vpop.permute.xlu0 %761
          %v764 = vmul.f32 %v742, %v762
          %v765 = vstv %s501
          %vm766 = vcmp.gt.s32.totalorder %v507, %v765
          %v767 = vsel %vm766, 1, 0
          %768 = vset.pattern.permute.xlu0 0
          %769 = vperm.xlu0 %768, %v767
          %v770 = vpop.permute.xlu0 %769
          %vm771 = vcmp.eq.s32.totalorder %v770, 1
          %772 = vrot.lane.b32.xlu0 %v661, 64
          %v773 = vpop.permute.xlu0 %772
          %v775 = vsel %vm771, %v764, %v773
          %v776 = vsel %vm771, %v758, %v746
          %v777 = vsel %vm771, %v764, 0.0
          %779 = vrot.lane.b32.xlu0 %v777, 64
          %v780 = vpop.permute.xlu0 %779
          %782 = vst.msk [vmem:[%s466] sm:$0xff] %vm531, %v780
          %784 = vrot.lane.b32.xlu0 %v775, 64
          %v785 = vpop.permute.xlu0 %784
          %v786 = vsel %vm531, %v785, 0
          %788 = vmatprep.subr.mxu0 0.0
          %789 = vmatpush1.msra.mxu0 0.0
          %790 = vmatprep.subr.mxu0 0.0
          %791 = vmatpush1.msra.mxu0 0.0
          %792 = vmatprep.subr.mxu0 0.0
          %793 = vmatpush1.msra.mxu0 0.0
          %794 = vmatprep.subr.mxu0 0.0
          %795 = vmatpush1.msra.mxu0 0.0
          %796 = vmatprep.subr.mxu0 0.0
          %797 = vmatpush1.msra.mxu0 0.0
          %798 = vmatprep.subr.mxu0 0.0
          %799 = vmatpush1.msra.mxu0 0.0
          %800 = vmatprep.subr.mxu0 0.0
          %801 = vmatpush1.msra.mxu0 0.0
          %802 = vmatprep.subr.mxu0 0.0
          %803 = vmatpush1.msra.mxu0 0.0
          %804 = vmatprep.subr.mxu0 0.0
          %805 = vmatpush1.msra.mxu0 0.0
          %806 = vmatprep.subr.mxu0 0.0
          %807 = vmatpush1.msra.mxu0 0.0
          %808 = vmatprep.subr.mxu0 0.0
          %809 = vmatpush1.msra.mxu0 0.0
          %810 = vmatprep.subr.mxu0 0.0
          %811 = vmatpush1.msra.mxu0 0.0
          %812 = vmatprep.subr.mxu0 0.0
          %813 = vmatpush1.msra.mxu0 %v515
          %814 = vmatprep.subr.mxu0 0.0
          %815 = vmatpush1.msra.mxu0 %v514
          %816 = vmatprep.subr.mxu0 0.0
          %817 = vmatpush1.msra.mxu0 %v513
          %818 = vmatprep.subr.mxu0 0.0
          %819 = vmatpush1.msra.mxu0 %v512
          %820 = vmatprep.subr.mxu0 0.0
          %821 = vmatpush2.msra.mxu0 0.0
          %822 = vmatprep.subr.mxu0 0.0
          %823 = vmatpush2.msra.mxu0 0.0
          %824 = vmatprep.subr.mxu0 0.0
          %825 = vmatpush2.msra.mxu0 0.0
          %826 = vmatprep.subr.mxu0 0.0
          %827 = vmatpush2.msra.mxu0 0.0
          %828 = vmatprep.subr.mxu0 0.0
          %829 = vmatpush2.msra.mxu0 0.0
          %830 = vmatprep.subr.mxu0 0.0
          %831 = vmatpush2.msra.mxu0 0.0
          %832 = vmatprep.subr.mxu0 0.0
          %833 = vmatpush2.msra.mxu0 0.0
          %834 = vmatprep.subr.mxu0 0.0
          %835 = vmatpush2.msra.mxu0 0.0
          %836 = vmatprep.subr.mxu0 0.0
          %837 = vmatpush2.msra.mxu0 0.0
          %838 = vmatprep.subr.mxu0 0.0
          %839 = vmatpush2.msra.mxu0 0.0
          %840 = vmatprep.subr.mxu0 0.0
          %841 = vmatpush2.msra.mxu0 0.0
          %842 = vmatprep.subr.mxu0 0.0
          %843 = vmatpush2.msra.mxu0 0.0
          %844 = vmatprep.subr.mxu0 0.0
          %845 = vmatpush2.msra.mxu0 0.0
          %846 = vmatprep.subr.mxu0 0.0
          %847 = vmatpush2.msra.mxu0 0.0
          %848 = vmatprep.subr.mxu0 0.0
          %849 = vmatpush2.msra.mxu0 0.0
          %850 = vmatprep.subr.mxu0 0.0
          %851 = vmatpush2.msra.mxu0 0.0
          %852 = vmatprep.mubr.f32.mxu0 0.0
          %853 = vmatmul.mubr.f32.gmra.mxu0 %v786
          %v854 = vpop.f32.mrf.mxu0
          %v855 = vadd.f32 0.0, %v854
          %v856 = vpop.f32.mrf.mxu0
          %857 = vdwg.mxu0
          %v858 = vadd.f32 %v628, %v855
          %v859 = vxor.u32 %v858, 2147483648
          %v860 = vmul.f32 %v859, 1.442695
          %v861 = vpow.pop %v860
          %v862 = vadd.f32 %v861, 1.0
          %v863 = vrcp.pop %v862
          %v864 = vmul.f32 1.0, %v863
          %v865 = vtanh.pop %v858
          %v866 = vmul.f32 %v864, %v776
          %868 = vrot.lane.b32.xlu0 %v865, 32
          %v869 = vpop.permute.xlu0 %868
          %v871 = vmul.f32 %v864, %v869
          %873 = vrot.lane.b32.xlu0 %v871, 32
          %v874 = vpop.permute.xlu0 %873
          %v876 = vadd.f32 %v866, %v874
          %v877 = vtanh.pop %v876
          %879 = vrot.lane.b32.xlu0 %v877, 32
          %v880 = vpop.permute.xlu0 %879
          %v882 = vmul.f32 %v864, %v880
          %s883 = sadd.s32 %s501, 1
          %v884 = vstv %s883
          %vm885 = vcmp.gt.s32.totalorder %v507, %v884
          %v886 = vsel %vm885, 1, 0
          %887 = vset.pattern.permute.xlu0 0
          %888 = vperm.xlu0 %887, %v886
          %v889 = vpop.permute.xlu0 %888
          %vm890 = vcmp.eq.s32.totalorder %v889, 1
          %v891 = vsel %vm890, %v882, %v775
          %v892 = vsel %vm890, %v876, %v776
          %v893 = vsel %vm890, %v882, 0.0
          %895 = vrot.lane.b32.xlu0 %v893, 64
          %v896 = vpop.permute.xlu0 %895
          %s898 = scalar_lea.vmem %s466, 8 [#allocation14]
          %899 = vst.msk [vmem:[%s898] sm:$0xff] %vm531, %v896
          %901 = vrot.lane.b32.xlu0 %v891, 64
          %v902 = vpop.permute.xlu0 %901
          %v903 = vsel %vm531, %v902, 0
          %905 = vmatprep.subr.mxu0 0.0
          %906 = vmatpush1.msra.mxu0 0.0
          %907 = vmatprep.subr.mxu0 0.0
          %908 = vmatpush1.msra.mxu0 0.0
          %909 = vmatprep.subr.mxu0 0.0
          %910 = vmatpush1.msra.mxu0 0.0
          %911 = vmatprep.subr.mxu0 0.0
          %912 = vmatpush1.msra.mxu0 0.0
          %913 = vmatprep.subr.mxu0 0.0
          %914 = vmatpush1.msra.mxu0 0.0
          %915 = vmatprep.subr.mxu0 0.0
          %916 = vmatpush1.msra.mxu0 0.0
          %917 = vmatprep.subr.mxu0 0.0
          %918 = vmatpush1.msra.mxu0 0.0
          %919 = vmatprep.subr.mxu0 0.0
          %920 = vmatpush1.msra.mxu0 0.0
          %921 = vmatprep.subr.mxu0 0.0
          %922 = vmatpush1.msra.mxu0 0.0
          %923 = vmatprep.subr.mxu0 0.0
          %924 = vmatpush1.msra.mxu0 0.0
          %925 = vmatprep.subr.mxu0 0.0
          %926 = vmatpush1.msra.mxu0 0.0
          %927 = vmatprep.subr.mxu0 0.0
          %928 = vmatpush1.msra.mxu0 0.0
          %929 = vmatprep.subr.mxu0 0.0
          %930 = vmatpush1.msra.mxu0 %v515
          %931 = vmatprep.subr.mxu0 0.0
          %932 = vmatpush1.msra.mxu0 %v514
          %933 = vmatprep.subr.mxu0 0.0
          %934 = vmatpush1.msra.mxu0 %v513
          %935 = vmatprep.subr.mxu0 0.0
          %936 = vmatpush1.msra.mxu0 %v512
          %937 = vmatprep.subr.mxu0 0.0
          %938 = vmatpush2.msra.mxu0 0.0
          %939 = vmatprep.subr.mxu0 0.0
          %940 = vmatpush2.msra.mxu0 0.0
          %941 = vmatprep.subr.mxu0 0.0
          %942 = vmatpush2.msra.mxu0 0.0
          %943 = vmatprep.subr.mxu0 0.0
          %944 = vmatpush2.msra.mxu0 0.0
          %945 = vmatprep.subr.mxu0 0.0
          %946 = vmatpush2.msra.mxu0 0.0
          %947 = vmatprep.subr.mxu0 0.0
          %948 = vmatpush2.msra.mxu0 0.0
          %949 = vmatprep.subr.mxu0 0.0
          %950 = vmatpush2.msra.mxu0 0.0
          %951 = vmatprep.subr.mxu0 0.0
          %952 = vmatpush2.msra.mxu0 0.0
          %953 = vmatprep.subr.mxu0 0.0
          %954 = vmatpush2.msra.mxu0 0.0
          %955 = vmatprep.subr.mxu0 0.0
          %956 = vmatpush2.msra.mxu0 0.0
          %957 = vmatprep.subr.mxu0 0.0
          %958 = vmatpush2.msra.mxu0 0.0
          %959 = vmatprep.subr.mxu0 0.0
          %960 = vmatpush2.msra.mxu0 0.0
          %961 = vmatprep.subr.mxu0 0.0
          %962 = vmatpush2.msra.mxu0 0.0
          %963 = vmatprep.subr.mxu0 0.0
          %964 = vmatpush2.msra.mxu0 0.0
          %965 = vmatprep.subr.mxu0 0.0
          %966 = vmatpush2.msra.mxu0 0.0
          %967 = vmatprep.subr.mxu0 0.0
          %968 = vmatpush2.msra.mxu0 0.0
          %969 = vmatprep.mubr.f32.mxu0 0.0
          %970 = vmatmul.mubr.f32.gmra.mxu0 %v903
          %v971 = vpop.f32.mrf.mxu0
          %v972 = vadd.f32 0.0, %v971
          %v973 = vpop.f32.mrf.mxu0
          %974 = vdwg.mxu0
          %v975 = vadd.f32 %v633, %v972
          %v976 = vxor.u32 %v975, 2147483648
          %v977 = vmul.f32 %v976, 1.442695
          %v978 = vpow.pop %v977
          %v979 = vadd.f32 %v978, 1.0
          %v980 = vrcp.pop %v979
          %v981 = vmul.f32 1.0, %v980
          %v982 = vtanh.pop %v975
          %v983 = vmul.f32 %v981, %v892
          %985 = vrot.lane.b32.xlu0 %v982, 32
          %v986 = vpop.permute.xlu0 %985
          %v988 = vmul.f32 %v981, %v986
          %990 = vrot.lane.b32.xlu0 %v988, 32
          %v991 = vpop.permute.xlu0 %990
          %v993 = vadd.f32 %v983, %v991
          %v994 = vtanh.pop %v993
          %996 = vrot.lane.b32.xlu0 %v994, 32
          %v997 = vpop.permute.xlu0 %996
          %v999 = vmul.f32 %v981, %v997
          %s1000 = sadd.s32 %s501, 2
          %v1001 = vstv %s1000
          %vm1002 = vcmp.gt.s32.totalorder %v507, %v1001
          %v1003 = vsel %vm1002, 1, 0
          %1004 = vset.pattern.permute.xlu0 0
          %1005 = vperm.xlu0 %1004, %v1003
          %v1006 = vpop.permute.xlu0 %1005
          %vm1007 = vcmp.eq.s32.totalorder %v1006, 1
          %v1008 = vsel %vm1007, %v999, %v891
          %v1009 = vsel %vm1007, %v993, %v892
          %v1010 = vsel %vm1007, %v999, 0.0
          %1012 = vrot.lane.b32.xlu0 %v1010, 64
          %v1013 = vpop.permute.xlu0 %1012
          %s1015 = scalar_lea.vmem %s466, 16 [#allocation14]
          %1016 = vst.msk [vmem:[%s1015] sm:$0xff] %vm531, %v1013
          %1018 = vrot.lane.b32.xlu0 %v1008, 64
          %v1019 = vpop.permute.xlu0 %1018
          %v1020 = vsel %vm531, %v1019, 0
          %1022 = vmatprep.subr.mxu0 0.0
          %1023 = vmatpush1.msra.mxu0 0.0
          %1024 = vmatprep.subr.mxu0 0.0
          %1025 = vmatpush1.msra.mxu0 0.0
          %1026 = vmatprep.subr.mxu0 0.0
          %1027 = vmatpush1.msra.mxu0 0.0
          %1028 = vmatprep.subr.mxu0 0.0
          %1029 = vmatpush1.msra.mxu0 0.0
          %1030 = vmatprep.subr.mxu0 0.0
          %1031 = vmatpush1.msra.mxu0 0.0
          %1032 = vmatprep.subr.mxu0 0.0
          %1033 = vmatpush1.msra.mxu0 0.0
          %1034 = vmatprep.subr.mxu0 0.0
          %1035 = vmatpush1.msra.mxu0 0.0
          %1036 = vmatprep.subr.mxu0 0.0
          %1037 = vmatpush1.msra.mxu0 0.0
          %1038 = vmatprep.subr.mxu0 0.0
          %1039 = vmatpush1.msra.mxu0 0.0
          %1040 = vmatprep.subr.mxu0 0.0
          %1041 = vmatpush1.msra.mxu0 0.0
          %1042 = vmatprep.subr.mxu0 0.0
          %1043 = vmatpush1.msra.mxu0 0.0
          %1044 = vmatprep.subr.mxu0 0.0
          %1045 = vmatpush1.msra.mxu0 0.0
          %1046 = vmatprep.subr.mxu0 0.0
          %1047 = vmatpush1.msra.mxu0 %v515
          %1048 = vmatprep.subr.mxu0 0.0
          %1049 = vmatpush1.msra.mxu0 %v514
          %1050 = vmatprep.subr.mxu0 0.0
          %1051 = vmatpush1.msra.mxu0 %v513
          %1052 = vmatprep.subr.mxu0 0.0
          %1053 = vmatpush1.msra.mxu0 %v512
          %1054 = vmatprep.subr.mxu0 0.0
          %1055 = vmatpush2.msra.mxu0 0.0
          %1056 = vmatprep.subr.mxu0 0.0
          %1057 = vmatpush2.msra.mxu0 0.0
          %1058 = vmatprep.subr.mxu0 0.0
          %1059 = vmatpush2.msra.mxu0 0.0
          %1060 = vmatprep.subr.mxu0 0.0
          %1061 = vmatpush2.msra.mxu0 0.0
          %1062 = vmatprep.subr.mxu0 0.0
          %1063 = vmatpush2.msra.mxu0 0.0
          %1064 = vmatprep.subr.mxu0 0.0
          %1065 = vmatpush2.msra.mxu0 0.0
          %1066 = vmatprep.subr.mxu0 0.0
          %1067 = vmatpush2.msra.mxu0 0.0
          %1068 = vmatprep.subr.mxu0 0.0
          %1069 = vmatpush2.msra.mxu0 0.0
          %1070 = vmatprep.subr.mxu0 0.0
          %1071 = vmatpush2.msra.mxu0 0.0
          %1072 = vmatprep.subr.mxu0 0.0
          %1073 = vmatpush2.msra.mxu0 0.0
          %1074 = vmatprep.subr.mxu0 0.0
          %1075 = vmatpush2.msra.mxu0 0.0
          %1076 = vmatprep.subr.mxu0 0.0
          %1077 = vmatpush2.msra.mxu0 0.0
          %1078 = vmatprep.subr.mxu0 0.0
          %1079 = vmatpush2.msra.mxu0 0.0
          %1080 = vmatprep.subr.mxu0 0.0
          %1081 = vmatpush2.msra.mxu0 0.0
          %1082 = vmatprep.subr.mxu0 0.0
          %1083 = vmatpush2.msra.mxu0 0.0
          %1084 = vmatprep.subr.mxu0 0.0
          %1085 = vmatpush2.msra.mxu0 0.0
          %1086 = vmatprep.mubr.f32.mxu0 0.0
          %1087 = vmatmul.mubr.f32.gmra.mxu0 %v1020
          %v1088 = vpop.f32.mrf.mxu0
          %v1089 = vadd.f32 0.0, %v1088
          %v1090 = vpop.f32.mrf.mxu0
          %1091 = vdwg.mxu0
          %v1092 = vadd.f32 %v638, %v1089
          %v1093 = vxor.u32 %v1092, 2147483648
          %v1094 = vmul.f32 %v1093, 1.442695
          %v1095 = vpow.pop %v1094
          %v1096 = vadd.f32 %v1095, 1.0
          %v1097 = vrcp.pop %v1096
          %v1098 = vmul.f32 1.0, %v1097
          %v1099 = vtanh.pop %v1092
          %v1100 = vmul.f32 %v1098, %v1009
          %1102 = vrot.lane.b32.xlu0 %v1099, 32
          %v1103 = vpop.permute.xlu0 %1102
          %v1105 = vmul.f32 %v1098, %v1103
          %1107 = vrot.lane.b32.xlu0 %v1105, 32
          %v1108 = vpop.permute.xlu0 %1107
          %v1110 = vadd.f32 %v1100, %v1108
          %v1111 = vtanh.pop %v1110
          %1113 = vrot.lane.b32.xlu0 %v1111, 32
          %v1114 = vpop.permute.xlu0 %1113
          %v1116 = vmul.f32 %v1098, %v1114
          %s1117 = sadd.s32 %s501, 3
          %v1118 = vstv %s1117
          %vm1119 = vcmp.gt.s32.totalorder %v507, %v1118
          %v1120 = vsel %vm1119, 1, 0
          %1121 = vset.pattern.permute.xlu0 0
          %1122 = vperm.xlu0 %1121, %v1120
          %v1123 = vpop.permute.xlu0 %1122
          %vm1124 = vcmp.eq.s32.totalorder %v1123, 1
          %v1125 = vsel %vm1124, %v1116, %v1008
          %v1126 = vsel %vm1124, %v1110, %v1009
          %v1127 = vsel %vm1124, %v1116, 0.0
          %1129 = vrot.lane.b32.xlu0 %v1127, 64
          %v1130 = vpop.permute.xlu0 %1129
          %s1132 = scalar_lea.vmem %s466, 24 [#allocation14]
          %1133 = vst.msk [vmem:[%s1132] sm:$0xff] %vm531, %v1130
          %1135 = vrot.lane.b32.xlu0 %v1125, 64
          %v1136 = vpop.permute.xlu0 %1135
          %v1137 = vsel %vm531, %v1136, 0
          %1139 = vmatprep.subr.mxu0 0.0
          %1140 = vmatpush1.msra.mxu0 0.0
          %1141 = vmatprep.subr.mxu0 0.0
          %1142 = vmatpush1.msra.mxu0 0.0
          %1143 = vmatprep.subr.mxu0 0.0
          %1144 = vmatpush1.msra.mxu0 0.0
          %1145 = vmatprep.subr.mxu0 0.0
          %1146 = vmatpush1.msra.mxu0 0.0
          %1147 = vmatprep.subr.mxu0 0.0
          %1148 = vmatpush1.msra.mxu0 0.0
          %1149 = vmatprep.subr.mxu0 0.0
          %1150 = vmatpush1.msra.mxu0 0.0
          %1151 = vmatprep.subr.mxu0 0.0
          %1152 = vmatpush1.msra.mxu0 0.0
          %1153 = vmatprep.subr.mxu0 0.0
          %1154 = vmatpush1.msra.mxu0 0.0
          %1155 = vmatprep.subr.mxu0 0.0
          %1156 = vmatpush1.msra.mxu0 0.0
          %1157 = vmatprep.subr.mxu0 0.0
          %1158 = vmatpush1.msra.mxu0 0.0
          %1159 = vmatprep.subr.mxu0 0.0
          %1160 = vmatpush1.msra.mxu0 0.0
          %1161 = vmatprep.subr.mxu0 0.0
          %1162 = vmatpush1.msra.mxu0 0.0
          %1163 = vmatprep.subr.mxu0 0.0
          %1164 = vmatpush1.msra.mxu0 %v515
          %1165 = vmatprep.subr.mxu0 0.0
          %1166 = vmatpush1.msra.mxu0 %v514
          %1167 = vmatprep.subr.mxu0 0.0
          %1168 = vmatpush1.msra.mxu0 %v513
          %1169 = vmatprep.subr.mxu0 0.0
          %1170 = vmatpush1.msra.mxu0 %v512
          %1171 = vmatprep.subr.mxu0 0.0
          %1172 = vmatpush2.msra.mxu0 0.0
          %1173 = vmatprep.subr.mxu0 0.0
          %1174 = vmatpush2.msra.mxu0 0.0
          %1175 = vmatprep.subr.mxu0 0.0
          %1176 = vmatpush2.msra.mxu0 0.0
          %1177 = vmatprep.subr.mxu0 0.0
          %1178 = vmatpush2.msra.mxu0 0.0
          %1179 = vmatprep.subr.mxu0 0.0
          %1180 = vmatpush2.msra.mxu0 0.0
          %1181 = vmatprep.subr.mxu0 0.0
          %1182 = vmatpush2.msra.mxu0 0.0
          %1183 = vmatprep.subr.mxu0 0.0
          %1184 = vmatpush2.msra.mxu0 0.0
          %1185 = vmatprep.subr.mxu0 0.0
          %1186 = vmatpush2.msra.mxu0 0.0
          %1187 = vmatprep.subr.mxu0 0.0
          %1188 = vmatpush2.msra.mxu0 0.0
          %1189 = vmatprep.subr.mxu0 0.0
          %1190 = vmatpush2.msra.mxu0 0.0
          %1191 = vmatprep.subr.mxu0 0.0
          %1192 = vmatpush2.msra.mxu0 0.0
          %1193 = vmatprep.subr.mxu0 0.0
          %1194 = vmatpush2.msra.mxu0 0.0
          %1195 = vmatprep.subr.mxu0 0.0
          %1196 = vmatpush2.msra.mxu0 0.0
          %1197 = vmatprep.subr.mxu0 0.0
          %1198 = vmatpush2.msra.mxu0 0.0
          %1199 = vmatprep.subr.mxu0 0.0
          %1200 = vmatpush2.msra.mxu0 0.0
          %1201 = vmatprep.subr.mxu0 0.0
          %1202 = vmatpush2.msra.mxu0 0.0
          %1203 = vmatprep.mubr.f32.mxu0 0.0
          %1204 = vmatmul.mubr.f32.gmra.mxu0 %v1137
          %v1205 = vpop.f32.mrf.mxu0
          %v1206 = vadd.f32 0.0, %v1205
          %v1207 = vpop.f32.mrf.mxu0
          %1208 = vdwg.mxu0
          %v1209 = vadd.f32 %v643, %v1206
          %v1210 = vxor.u32 %v1209, 2147483648
          %v1211 = vmul.f32 %v1210, 1.442695
          %v1212 = vpow.pop %v1211
          %v1213 = vadd.f32 %v1212, 1.0
          %v1214 = vrcp.pop %v1213
          %v1215 = vmul.f32 1.0, %v1214
          %v1216 = vtanh.pop %v1209
          %v1217 = vmul.f32 %v1215, %v1126
          %1219 = vrot.lane.b32.xlu0 %v1216, 32
          %v1220 = vpop.permute.xlu0 %1219
          %v1222 = vmul.f32 %v1215, %v1220
          %1224 = vrot.lane.b32.xlu0 %v1222, 32
          %v1225 = vpop.permute.xlu0 %1224
          %v1227 = vadd.f32 %v1217, %v1225
          %v1228 = vtanh.pop %v1227
          %1230 = vrot.lane.b32.xlu0 %v1228, 32
          %v1231 = vpop.permute.xlu0 %1230
          %v1233 = vmul.f32 %v1215, %v1231
          %s1234 = sadd.s32 %s501, 4
          %v1235 = vstv %s1234
          %vm1236 = vcmp.gt.s32.totalorder %v507, %v1235
          %v1237 = vsel %vm1236, 1, 0
          %1238 = vset.pattern.permute.xlu0 0
          %1239 = vperm.xlu0 %1238, %v1237
          %v1240 = vpop.permute.xlu0 %1239
          %vm1241 = vcmp.eq.s32.totalorder %v1240, 1
          %v1242 = vsel %vm1241, %v1233, %v1125
          %v1243 = vsel %vm1241, %v1227, %v1126
          %v1244 = vsel %vm1241, %v1233, 0.0
          %1246 = vrot.lane.b32.xlu0 %v1244, 64
          %v1247 = vpop.permute.xlu0 %1246
          %s1249 = scalar_lea.vmem %s466, 32 [#allocation14]
          %1250 = vst.msk [vmem:[%s1249] sm:$0xff] %vm531, %v1247
          %1252 = vrot.lane.b32.xlu0 %v1242, 64
          %v1253 = vpop.permute.xlu0 %1252
          %v1254 = vsel %vm531, %v1253, 0
          %1256 = vmatprep.subr.mxu0 0.0
          %1257 = vmatpush1.msra.mxu0 0.0
          %1258 = vmatprep.subr.mxu0 0.0
          %1259 = vmatpush1.msra.mxu0 0.0
          %1260 = vmatprep.subr.mxu0 0.0
          %1261 = vmatpush1.msra.mxu0 0.0
          %1262 = vmatprep.subr.mxu0 0.0
          %1263 = vmatpush1.msra.mxu0 0.0
          %1264 = vmatprep.subr.mxu0 0.0
          %1265 = vmatpush1.msra.mxu0 0.0
          %1266 = vmatprep.subr.mxu0 0.0
          %1267 = vmatpush1.msra.mxu0 0.0
          %1268 = vmatprep.subr.mxu0 0.0
          %1269 = vmatpush1.msra.mxu0 0.0
          %1270 = vmatprep.subr.mxu0 0.0
          %1271 = vmatpush1.msra.mxu0 0.0
          %1272 = vmatprep.subr.mxu0 0.0
          %1273 = vmatpush1.msra.mxu0 0.0
          %1274 = vmatprep.subr.mxu0 0.0
          %1275 = vmatpush1.msra.mxu0 0.0
          %1276 = vmatprep.subr.mxu0 0.0
          %1277 = vmatpush1.msra.mxu0 0.0
          %1278 = vmatprep.subr.mxu0 0.0
          %1279 = vmatpush1.msra.mxu0 0.0
          %1280 = vmatprep.subr.mxu0 0.0
          %1281 = vmatpush1.msra.mxu0 %v515
          %1282 = vmatprep.subr.mxu0 0.0
          %1283 = vmatpush1.msra.mxu0 %v514
          %1284 = vmatprep.subr.mxu0 0.0
          %1285 = vmatpush1.msra.mxu0 %v513
          %1286 = vmatprep.subr.mxu0 0.0
          %1287 = vmatpush1.msra.mxu0 %v512
          %1288 = vmatprep.subr.mxu0 0.0
          %1289 = vmatpush2.msra.mxu0 0.0
          %1290 = vmatprep.subr.mxu0 0.0
          %1291 = vmatpush2.msra.mxu0 0.0
          %1292 = vmatprep.subr.mxu0 0.0
          %1293 = vmatpush2.msra.mxu0 0.0
          %1294 = vmatprep.subr.mxu0 0.0
          %1295 = vmatpush2.msra.mxu0 0.0
          %1296 = vmatprep.subr.mxu0 0.0
          %1297 = vmatpush2.msra.mxu0 0.0
          %1298 = vmatprep.subr.mxu0 0.0
          %1299 = vmatpush2.msra.mxu0 0.0
          %1300 = vmatprep.subr.mxu0 0.0
          %1301 = vmatpush2.msra.mxu0 0.0
          %1302 = vmatprep.subr.mxu0 0.0
          %1303 = vmatpush2.msra.mxu0 0.0
          %1304 = vmatprep.subr.mxu0 0.0
          %1305 = vmatpush2.msra.mxu0 0.0
          %1306 = vmatprep.subr.mxu0 0.0
          %1307 = vmatpush2.msra.mxu0 0.0
          %1308 = vmatprep.subr.mxu0 0.0
          %1309 = vmatpush2.msra.mxu0 0.0
          %1310 = vmatprep.subr.mxu0 0.0
          %1311 = vmatpush2.msra.mxu0 0.0
          %1312 = vmatprep.subr.mxu0 0.0
          %1313 = vmatpush2.msra.mxu0 0.0
          %1314 = vmatprep.subr.mxu0 0.0
          %1315 = vmatpush2.msra.mxu0 0.0
          %1316 = vmatprep.subr.mxu0 0.0
          %1317 = vmatpush2.msra.mxu0 0.0
          %1318 = vmatprep.subr.mxu0 0.0
          %1319 = vmatpush2.msra.mxu0 0.0
          %1320 = vmatprep.mubr.f32.mxu0 0.0
          %1321 = vmatmul.mubr.f32.gmra.mxu0 %v1254
          %v1322 = vpop.f32.mrf.mxu0
          %v1323 = vadd.f32 0.0, %v1322
          %v1324 = vpop.f32.mrf.mxu0
          %1325 = vdwg.mxu0
          %v1326 = vadd.f32 %v648, %v1323
          %v1327 = vxor.u32 %v1326, 2147483648
          %v1328 = vmul.f32 %v1327, 1.442695
          %v1329 = vpow.pop %v1328
          %v1330 = vadd.f32 %v1329, 1.0
          %v1331 = vrcp.pop %v1330
          %v1332 = vmul.f32 1.0, %v1331
          %v1333 = vtanh.pop %v1326
          %v1334 = vmul.f32 %v1332, %v1243
          %1336 = vrot.lane.b32.xlu0 %v1333, 32
          %v1337 = vpop.permute.xlu0 %1336
          %v1339 = vmul.f32 %v1332, %v1337
          %1341 = vrot.lane.b32.xlu0 %v1339, 32
          %v1342 = vpop.permute.xlu0 %1341
          %v1344 = vadd.f32 %v1334, %v1342
          %v1345 = vtanh.pop %v1344
          %1347 = vrot.lane.b32.xlu0 %v1345, 32
          %v1348 = vpop.permute.xlu0 %1347
          %v1350 = vmul.f32 %v1332, %v1348
          %s1351 = sadd.s32 %s501, 5
          %v1352 = vstv %s1351
          %vm1353 = vcmp.gt.s32.totalorder %v507, %v1352
          %v1354 = vsel %vm1353, 1, 0
          %1355 = vset.pattern.permute.xlu0 0
          %1356 = vperm.xlu0 %1355, %v1354
          %v1357 = vpop.permute.xlu0 %1356
          %vm1358 = vcmp.eq.s32.totalorder %v1357, 1
          %v1359 = vsel %vm1358, %v1350, %v1242
          %v1360 = vsel %vm1358, %v1344, %v1243
          %v1361 = vsel %vm1358, %v1350, 0.0
          %1363 = vrot.lane.b32.xlu0 %v1361, 64
          %v1364 = vpop.permute.xlu0 %1363
          %s1366 = scalar_lea.vmem %s466, 40 [#allocation14]
          %1367 = vst.msk [vmem:[%s1366] sm:$0xff] %vm531, %v1364
          %1369 = vrot.lane.b32.xlu0 %v1359, 64
          %v1370 = vpop.permute.xlu0 %1369
          %v1371 = vsel %vm531, %v1370, 0
          %1373 = vmatprep.subr.mxu0 0.0
          %1374 = vmatpush1.msra.mxu0 0.0
          %1375 = vmatprep.subr.mxu0 0.0
          %1376 = vmatpush1.msra.mxu0 0.0
          %1377 = vmatprep.subr.mxu0 0.0
          %1378 = vmatpush1.msra.mxu0 0.0
          %1379 = vmatprep.subr.mxu0 0.0
          %1380 = vmatpush1.msra.mxu0 0.0
          %1381 = vmatprep.subr.mxu0 0.0
          %1382 = vmatpush1.msra.mxu0 0.0
          %1383 = vmatprep.subr.mxu0 0.0
          %1384 = vmatpush1.msra.mxu0 0.0
          %1385 = vmatprep.subr.mxu0 0.0
          %1386 = vmatpush1.msra.mxu0 0.0
          %1387 = vmatprep.subr.mxu0 0.0
          %1388 = vmatpush1.msra.mxu0 0.0
          %1389 = vmatprep.subr.mxu0 0.0
          %1390 = vmatpush1.msra.mxu0 0.0
          %1391 = vmatprep.subr.mxu0 0.0
          %1392 = vmatpush1.msra.mxu0 0.0
          %1393 = vmatprep.subr.mxu0 0.0
          %1394 = vmatpush1.msra.mxu0 0.0
          %1395 = vmatprep.subr.mxu0 0.0
          %1396 = vmatpush1.msra.mxu0 0.0
          %1397 = vmatprep.subr.mxu0 0.0
          %1398 = vmatpush1.msra.mxu0 %v515
          %1399 = vmatprep.subr.mxu0 0.0
          %1400 = vmatpush1.msra.mxu0 %v514
          %1401 = vmatprep.subr.mxu0 0.0
          %1402 = vmatpush1.msra.mxu0 %v513
          %1403 = vmatprep.subr.mxu0 0.0
          %1404 = vmatpush1.msra.mxu0 %v512
          %1405 = vmatprep.subr.mxu0 0.0
          %1406 = vmatpush2.msra.mxu0 0.0
          %1407 = vmatprep.subr.mxu0 0.0
          %1408 = vmatpush2.msra.mxu0 0.0
          %1409 = vmatprep.subr.mxu0 0.0
          %1410 = vmatpush2.msra.mxu0 0.0
          %1411 = vmatprep.subr.mxu0 0.0
          %1412 = vmatpush2.msra.mxu0 0.0
          %1413 = vmatprep.subr.mxu0 0.0
          %1414 = vmatpush2.msra.mxu0 0.0
          %1415 = vmatprep.subr.mxu0 0.0
          %1416 = vmatpush2.msra.mxu0 0.0
          %1417 = vmatprep.subr.mxu0 0.0
          %1418 = vmatpush2.msra.mxu0 0.0
          %1419 = vmatprep.subr.mxu0 0.0
          %1420 = vmatpush2.msra.mxu0 0.0
          %1421 = vmatprep.subr.mxu0 0.0
          %1422 = vmatpush2.msra.mxu0 0.0
          %1423 = vmatprep.subr.mxu0 0.0
          %1424 = vmatpush2.msra.mxu0 0.0
          %1425 = vmatprep.subr.mxu0 0.0
          %1426 = vmatpush2.msra.mxu0 0.0
          %1427 = vmatprep.subr.mxu0 0.0
          %1428 = vmatpush2.msra.mxu0 0.0
          %1429 = vmatprep.subr.mxu0 0.0
          %1430 = vmatpush2.msra.mxu0 0.0
          %1431 = vmatprep.subr.mxu0 0.0
          %1432 = vmatpush2.msra.mxu0 0.0
          %1433 = vmatprep.subr.mxu0 0.0
          %1434 = vmatpush2.msra.mxu0 0.0
          %1435 = vmatprep.subr.mxu0 0.0
          %1436 = vmatpush2.msra.mxu0 0.0
          %1437 = vmatprep.mubr.f32.mxu0 0.0
          %1438 = vmatmul.mubr.f32.gmra.mxu0 %v1371
          %v1439 = vpop.f32.mrf.mxu0
          %v1440 = vadd.f32 0.0, %v1439
          %v1441 = vpop.f32.mrf.mxu0
          %1442 = vdwg.mxu0
          %v1443 = vadd.f32 %v653, %v1440
          %v1444 = vxor.u32 %v1443, 2147483648
          %v1445 = vmul.f32 %v1444, 1.442695
          %v1446 = vpow.pop %v1445
          %v1447 = vadd.f32 %v1446, 1.0
          %v1448 = vrcp.pop %v1447
          %v1449 = vmul.f32 1.0, %v1448
          %v1450 = vtanh.pop %v1443
          %v1451 = vmul.f32 %v1449, %v1360
          %1453 = vrot.lane.b32.xlu0 %v1450, 32
          %v1454 = vpop.permute.xlu0 %1453
          %v1456 = vmul.f32 %v1449, %v1454
          %1458 = vrot.lane.b32.xlu0 %v1456, 32
          %v1459 = vpop.permute.xlu0 %1458
          %v1461 = vadd.f32 %v1451, %v1459
          %v1462 = vtanh.pop %v1461
          %1464 = vrot.lane.b32.xlu0 %v1462, 32
          %v1465 = vpop.permute.xlu0 %1464
          %v1467 = vmul.f32 %v1449, %v1465
          %s1468 = sadd.s32 %s501, 6
          %v1469 = vstv %s1468
          %vm1470 = vcmp.gt.s32.totalorder %v507, %v1469
          %v1471 = vsel %vm1470, 1, 0
          %1472 = vset.pattern.permute.xlu0 0
          %1473 = vperm.xlu0 %1472, %v1471
          %v1474 = vpop.permute.xlu0 %1473
          %vm1475 = vcmp.eq.s32.totalorder %v1474, 1
          %v1476 = vsel %vm1475, %v1467, %v1359
          %v1477 = vsel %vm1475, %v1461, %v1360
          %v1478 = vsel %vm1475, %v1467, 0.0
          %1480 = vrot.lane.b32.xlu0 %v1478, 64
          %v1481 = vpop.permute.xlu0 %1480
          %s1483 = scalar_lea.vmem %s466, 48 [#allocation14]
          %1484 = vst.msk [vmem:[%s1483] sm:$0xff] %vm531, %v1481
          %1486 = vrot.lane.b32.xlu0 %v1476, 64
          %v1487 = vpop.permute.xlu0 %1486
          %v1488 = vsel %vm531, %v1487, 0
          %1490 = vmatprep.subr.mxu0 0.0
          %1491 = vmatpush1.msra.mxu0 0.0
          %1492 = vmatprep.subr.mxu0 0.0
          %1493 = vmatpush1.msra.mxu0 0.0
          %1494 = vmatprep.subr.mxu0 0.0
          %1495 = vmatpush1.msra.mxu0 0.0
          %1496 = vmatprep.subr.mxu0 0.0
          %1497 = vmatpush1.msra.mxu0 0.0
          %1498 = vmatprep.subr.mxu0 0.0
          %1499 = vmatpush1.msra.mxu0 0.0
          %1500 = vmatprep.subr.mxu0 0.0
          %1501 = vmatpush1.msra.mxu0 0.0
          %1502 = vmatprep.subr.mxu0 0.0
          %1503 = vmatpush1.msra.mxu0 0.0
          %1504 = vmatprep.subr.mxu0 0.0
          %1505 = vmatpush1.msra.mxu0 0.0
          %1506 = vmatprep.subr.mxu0 0.0
          %1507 = vmatpush1.msra.mxu0 0.0
          %1508 = vmatprep.subr.mxu0 0.0
          %1509 = vmatpush1.msra.mxu0 0.0
          %1510 = vmatprep.subr.mxu0 0.0
          %1511 = vmatpush1.msra.mxu0 0.0
          %1512 = vmatprep.subr.mxu0 0.0
          %1513 = vmatpush1.msra.mxu0 0.0
          %1514 = vmatprep.subr.mxu0 0.0
          %1515 = vmatpush1.msra.mxu0 %v515
          %1516 = vmatprep.subr.mxu0 0.0
          %1517 = vmatpush1.msra.mxu0 %v514
          %1518 = vmatprep.subr.mxu0 0.0
          %1519 = vmatpush1.msra.mxu0 %v513
          %1520 = vmatprep.subr.mxu0 0.0
          %1521 = vmatpush1.msra.mxu0 %v512
          %1522 = vmatprep.subr.mxu0 0.0
          %1523 = vmatpush2.msra.mxu0 0.0
          %1524 = vmatprep.subr.mxu0 0.0
          %1525 = vmatpush2.msra.mxu0 0.0
          %1526 = vmatprep.subr.mxu0 0.0
          %1527 = vmatpush2.msra.mxu0 0.0
          %1528 = vmatprep.subr.mxu0 0.0
          %1529 = vmatpush2.msra.mxu0 0.0
          %1530 = vmatprep.subr.mxu0 0.0
          %1531 = vmatpush2.msra.mxu0 0.0
          %1532 = vmatprep.subr.mxu0 0.0
          %1533 = vmatpush2.msra.mxu0 0.0
          %1534 = vmatprep.subr.mxu0 0.0
          %1535 = vmatpush2.msra.mxu0 0.0
          %1536 = vmatprep.subr.mxu0 0.0
          %1537 = vmatpush2.msra.mxu0 0.0
          %1538 = vmatprep.subr.mxu0 0.0
          %1539 = vmatpush2.msra.mxu0 0.0
          %1540 = vmatprep.subr.mxu0 0.0
          %1541 = vmatpush2.msra.mxu0 0.0
          %1542 = vmatprep.subr.mxu0 0.0
          %1543 = vmatpush2.msra.mxu0 0.0
          %1544 = vmatprep.subr.mxu0 0.0
          %1545 = vmatpush2.msra.mxu0 0.0
          %1546 = vmatprep.subr.mxu0 0.0
          %1547 = vmatpush2.msra.mxu0 0.0
          %1548 = vmatprep.subr.mxu0 0.0
          %1549 = vmatpush2.msra.mxu0 0.0
          %1550 = vmatprep.subr.mxu0 0.0
          %1551 = vmatpush2.msra.mxu0 0.0
          %1552 = vmatprep.subr.mxu0 0.0
          %1553 = vmatpush2.msra.mxu0 0.0
          %1554 = vmatprep.mubr.f32.mxu0 0.0
          %1555 = vmatmul.mubr.f32.gmra.mxu0 %v1488
          %v1556 = vpop.f32.mrf.mxu0
          %v1557 = vadd.f32 0.0, %v1556
          %v1558 = vpop.f32.mrf.mxu0
          %1559 = vdwg.mxu0
          %v1560 = vadd.f32 %v658, %v1557
          %v1561 = vxor.u32 %v1560, 2147483648
          %v1562 = vmul.f32 %v1561, 1.442695
          %v1563 = vpow.pop %v1562
          %v1564 = vadd.f32 %v1563, 1.0
          %v1565 = vrcp.pop %v1564
          %v1566 = vmul.f32 1.0, %v1565
          %v1567 = vtanh.pop %v1560
          %v1568 = vmul.f32 %v1566, %v1477
          %1570 = vrot.lane.b32.xlu0 %v1567, 32
          %v1571 = vpop.permute.xlu0 %1570
          %v1573 = vmul.f32 %v1566, %v1571
          %1575 = vrot.lane.b32.xlu0 %v1573, 32
          %v1576 = vpop.permute.xlu0 %1575
          %v1578 = vadd.f32 %v1568, %v1576
          %v1579 = vtanh.pop %v1578
          %1581 = vrot.lane.b32.xlu0 %v1579, 32
          %v1582 = vpop.permute.xlu0 %1581
          %v1584 = vmul.f32 %v1566, %v1582
          %s1585 = sadd.s32 %s501, 7
          %v1586 = vstv %s1585
          %vm1587 = vcmp.gt.s32.totalorder %v507, %v1586
          %v1588 = vsel %vm1587, 1, 0
          %1589 = vset.pattern.permute.xlu0 0
          %1590 = vperm.xlu0 %1589, %v1588
          %v1591 = vpop.permute.xlu0 %1590
          %vm1592 = vcmp.eq.s32.totalorder %v1591, 1
          %v1593 = vsel %vm1592, %v1584, %v1476
          %v1594 = vsel %vm1592, %v1578, %v1477
          %v1595 = vsel %vm1592, %v1584, 0.0
          %1597 = vrot.lane.b32.xlu0 %v1595, 64
          %v1598 = vpop.permute.xlu0 %1597
          %s1600 = scalar_lea.vmem %s466, 56 [#allocation14]
          %1601 = vst.msk [vmem:[%s1600] sm:$0xff] %vm531, %v1598
          %1603 = vrot.lane.b32.xlu0 %v1593, 64
          %v1604 = vpop.permute.xlu0 %1603
          %1606 = vst.msk [vmem:[#allocation2] sm:$0xff] %vm531, %v1604
          %1608 = vrot.lane.b32.xlu0 %v1594, 96
          %v1609 = vpop.permute.xlu0 %1608
          %1611 = vst.msk [vmem:[#allocation3] sm:$0xff] %vm531, %v1609
        $region72: #{tpu_custom_call.1} parent=47 // pred_fallthru
          _
        %p1612 = scmp.ge.s32.totalorder %s501, %s502
        // Predicated region
        $region73: #{tpu_custom_call.1} parent=47 // pred_check
          %p1613 = pneg %p1612
        $region74: #{tpu_custom_call.1} parent=47 // pred_check_branch
          %1615 = sbr.rel (%p1613) target = $region76
        $region75: #{tpu_custom_call.1} parent=47 // pred_region
          %vm1616 = vcmask 261120
          %1617 = vst.msk [vmem:[%s466] sm:$0xff] %vm1616, 0.0
          %1618 = vst.msk [vmem:[%s466 + $0x8] sm:$0xff] %vm1616, 0.0
          %1619 = vst.msk [vmem:[%s466 + $0x10] sm:$0xff] %vm1616, 0.0
          %1620 = vst.msk [vmem:[%s466 + $0x18] sm:$0xff] %vm1616, 0.0
          %1621 = vst.msk [vmem:[%s466 + $0x20] sm:$0xff] %vm1616, 0.0
          %1622 = vst.msk [vmem:[%s466 + $0x28] sm:$0xff] %vm1616, 0.0
          %1623 = vst.msk [vmem:[%s466 + $0x30] sm:$0xff] %vm1616, 0.0
          %1624 = vst.msk [vmem:[%s466 + $0x38] sm:$0xff] %vm1616, 0.0
        $region76: #{tpu_custom_call.1} parent=47 // pred_fallthru
          _
        %p1625 = scmp.eq.s32.totalorder %s48, 1
        // Predicated region
        $region77: #{tpu_custom_call.1} parent=47 // pred_check
          %p1626 = pneg %p1625
        $region78: #{tpu_custom_call.1} parent=47 // pred_check_branch
          %1628 = sbr.rel (%p1626) target = $region80
        $region79: #{tpu_custom_call.1} parent=47 // pred_region
          %v1629 = vld [vmem:[#allocation2] sm:$0xff]
          %vm1630 = vcmask 261120
          %1631 = vst.msk [vmem:[%s473] sm:$0xff] %vm1630, %v1629
          %v1632 = vld [vmem:[#allocation3] sm:$0xff]
          %1633 = vst.msk [vmem:[%s480] sm:$0xff] %vm1630, %v1632
          %v1634 = vld [vmem:[#allocation12] sm:$0xff]
          %v1635 = vld [vmem:[#allocation12 + $0x8] sm:$0xff]
          %v1636 = vld [vmem:[#allocation12 + $0x10] sm:$0xff]
          %v1637 = vld [vmem:[#allocation12 + $0x18] sm:$0xff]
          %v1638 = vld [vmem:[%s7] sm:$0x1]
          %v1640 = vlaneseq
          %v1641 = vshrl.u32 %v1640, 7
          %v1642 = vsub.s32 0, %v1641
          %v1643 = vrot.slane %v1638, %v1642
          %v1646 = vsel %vm1630, %v1629, 0
          %1648 = vmatprep.subr.mxu0 0.0
          %1649 = vmatpush1.msra.mxu0 0.0
          %1650 = vmatprep.subr.mxu0 0.0
          %1651 = vmatpush1.msra.mxu0 0.0
          %1652 = vmatprep.subr.mxu0 0.0
          %1653 = vmatpush1.msra.mxu0 0.0
          %1654 = vmatprep.subr.mxu0 0.0
          %1655 = vmatpush1.msra.mxu0 0.0
          %1656 = vmatprep.subr.mxu0 0.0
          %1657 = vmatpush1.msra.mxu0 0.0
          %1658 = vmatprep.subr.mxu0 0.0
          %1659 = vmatpush1.msra.mxu0 0.0
          %1660 = vmatprep.subr.mxu0 0.0
          %1661 = vmatpush1.msra.mxu0 0.0
          %1662 = vmatprep.subr.mxu0 0.0
          %1663 = vmatpush1.msra.mxu0 0.0
          %1664 = vmatprep.subr.mxu0 0.0
          %1665 = vmatpush1.msra.mxu0 0.0
          %1666 = vmatprep.subr.mxu0 0.0
          %1667 = vmatpush1.msra.mxu0 0.0
          %1668 = vmatprep.subr.mxu0 0.0
          %1669 = vmatpush1.msra.mxu0 0.0
          %1670 = vmatprep.subr.mxu0 0.0
          %1671 = vmatpush1.msra.mxu0 0.0
          %1672 = vmatprep.subr.mxu0 0.0
          %1673 = vmatpush1.msra.mxu0 %v1637
          %1674 = vmatprep.subr.mxu0 0.0
          %1675 = vmatpush1.msra.mxu0 %v1636
          %1676 = vmatprep.subr.mxu0 0.0
          %1677 = vmatpush1.msra.mxu0 %v1635
          %1678 = vmatprep.subr.mxu0 0.0
          %1679 = vmatpush1.msra.mxu0 %v1634
          %1680 = vmatprep.subr.mxu0 0.0
          %1681 = vmatpush2.msra.mxu0 0.0
          %1682 = vmatprep.subr.mxu0 0.0
          %1683 = vmatpush2.msra.mxu0 0.0
          %1684 = vmatprep.subr.mxu0 0.0
          %1685 = vmatpush2.msra.mxu0 0.0
          %1686 = vmatprep.subr.mxu0 0.0
          %1687 = vmatpush2.msra.mxu0 0.0
          %1688 = vmatprep.subr.mxu0 0.0
          %1689 = vmatpush2.msra.mxu0 0.0
          %1690 = vmatprep.subr.mxu0 0.0
          %1691 = vmatpush2.msra.mxu0 0.0
          %1692 = vmatprep.subr.mxu0 0.0
          %1693 = vmatpush2.msra.mxu0 0.0
          %1694 = vmatprep.subr.mxu0 0.0
          %1695 = vmatpush2.msra.mxu0 0.0
          %1696 = vmatprep.subr.mxu0 0.0
          %1697 = vmatpush2.msra.mxu0 0.0
          %1698 = vmatprep.subr.mxu0 0.0
          %1699 = vmatpush2.msra.mxu0 0.0
          %1700 = vmatprep.subr.mxu0 0.0
          %1701 = vmatpush2.msra.mxu0 0.0
          %1702 = vmatprep.subr.mxu0 0.0
          %1703 = vmatpush2.msra.mxu0 0.0
          %1704 = vmatprep.subr.mxu0 0.0
          %1705 = vmatpush2.msra.mxu0 0.0
          %1706 = vmatprep.subr.mxu0 0.0
          %1707 = vmatpush2.msra.mxu0 0.0
          %1708 = vmatprep.subr.mxu0 0.0
          %1709 = vmatpush2.msra.mxu0 0.0
          %1710 = vmatprep.subr.mxu0 0.0
          %1711 = vmatpush2.msra.mxu0 0.0
          %1712 = vmatprep.mubr.f32.mxu0 0.0
          %1713 = vmatmul.mubr.f32.gmra.mxu0 %v1646
          %v1714 = vpop.f32.mrf.mxu0
          %v1715 = vadd.f32 %v1643, %v1714
          %v1716 = vpop.f32.mrf.mxu0
          %1717 = vdwg.mxu0
          %v1718 = vtanh.pop %v1715
          %1719 = vst.msk [vmem:[%s487] sm:$0xff] %vm1630, %v1718
        $region80: #{tpu_custom_call.1} parent=47 // pred_fallthru
          _
        %s1720 = sand.u32 %s224, 1
        %s1721 = scalar_lea.sflag [#allocation8], %s1720
        %s1722 = sand.u32 %s224, 1
        %s1723 = smul.addr %s1722, 64
        %s1724 = scalar_lea.vmem [#allocation14], %s1723
        %s1725 = sand.u32 %s43, 1
        %s1726 = scalar_lea.sflag [#allocation16], %s1725
        %s1727 = sand.u32 %s250, 1
        %s1728 = smul.addr %s1727, 8
        %s1729 = scalar_lea.vmem [#allocation15], %s1728
        %s1730 = sand.u32 %s43, 1
        %s1731 = scalar_lea.sflag [#allocation16], %s1730
        %s1732 = sand.u32 %s276, 1
        %s1733 = smul.addr %s1732, 8
        %s1734 = scalar_lea.vmem [#allocation17], %s1733
        %s1735 = sand.u32 %s302, 1
        %s1736 = scalar_lea.sflag [#allocation19], %s1735
        %s1737 = sand.u32 %s302, 1
        %s1738 = smul.addr %s1737, 8
        %s1739 = scalar_lea.vmem [#allocation18], %s1738
        // Predicated region
        $region81: #{tpu_custom_call.1} parent=47 // pred_check
          %p1740 = pneg %p234
        $region82: #{tpu_custom_call.1} parent=47 // pred_check_branch
          %1742 = sbr.rel (%p1740) target = $region84
        $region83: #{tpu_custom_call.1} parent=47 // pred_region
          %s1743 = smul.u32 8, %s48
          %s1745 = ssub.s32 1024, 1024
          %1746 = vsyncadd %s1721, %s1745
          %s1747 = smul.addr %s1743, 2
          %s1748 = sadd.s32 %s47, %s1747
          %s1749 = smul.addr %s1748, 128
          %s1750 = scalar_lea.hbm %s8, %s1749
          %s1751 = sshll.u32 %s1724, 4
          %s1752 = int_to_ptr.vmem [resolvable:$true] %s1751
          %1757 = dma.vmem_to_hbm [thread:$0]  %s1752, 1024, %s1750, %s1721, 128, 256, 8
        $region84: #{tpu_custom_call.1} parent=47 // pred_fallthru
          _
        // Predicated region
        $region85: #{tpu_custom_call.1} parent=47 // pred_check
          %p1758 = pneg %p260
        $region86: #{tpu_custom_call.1} parent=47 // pred_check_branch
          %1760 = sbr.rel (%p1758) target = $region88
        $region87: #{tpu_custom_call.1} parent=47 // pred_region
          %s1762 = ssub.s32 128, 128
          %1763 = vsyncadd %s1726, %s1762
          %s1764 = smul.addr %s47, 128
          %s1765 = scalar_lea.hbm %s9, %s1764
          %s1767 = sshll.u32 %s1729, 4
          %s1768 = int_to_ptr.vmem [resolvable:$true] %s1767
          %1770 = dma.vmem_to_hbm [thread:$0]  %s1768, 128, %s1765, %s1726
        $region88: #{tpu_custom_call.1} parent=47 // pred_fallthru
          _
        // Predicated region
        $region89: #{tpu_custom_call.1} parent=47 // pred_check
          %p1771 = pneg %p286
        $region90: #{tpu_custom_call.1} parent=47 // pred_check_branch
          %1773 = sbr.rel (%p1771) target = $region92
        $region91: #{tpu_custom_call.1} parent=47 // pred_region
          %s1775 = ssub.s32 128, 128
          %1776 = vsyncadd %s1731, %s1775
          %s1777 = smul.addr %s47, 128
          %s1778 = scalar_lea.hbm %s10, %s1777
          %s1780 = sshll.u32 %s1734, 4
          %s1781 = int_to_ptr.vmem [resolvable:$true] %s1780
          %1783 = dma.vmem_to_hbm [thread:$0]  %s1781, 128, %s1778, %s1731
        $region92: #{tpu_custom_call.1} parent=47 // pred_fallthru
          _
        // Predicated region
        $region93: #{tpu_custom_call.1} parent=47 // pred_check
          %p1784 = pneg %p312
        $region94: #{tpu_custom_call.1} parent=47 // pred_check_branch
          %1786 = sbr.rel (%p1784) target = $region96
        $region95: #{tpu_custom_call.1} parent=47 // pred_region
          %s1788 = ssub.s32 128, 128
          %1789 = vsyncadd %s1736, %s1788
          %s1790 = smul.addr %s47, 128
          %s1791 = scalar_lea.hbm %s11, %s1790
          %s1793 = sshll.u32 %s1739, 4
          %s1794 = int_to_ptr.vmem [resolvable:$true] %s1793
          %1796 = dma.vmem_to_hbm [thread:$0]  %s1794, 128, %s1791, %s1736
        $region96: #{tpu_custom_call.1} parent=47 // pred_fallthru
          _
      $region48: #{tpu_custom_call.1} parent=5 // pred_fallthru
        _
      %p1797 = scmp.le.s32.totalorder 2, %s38
      // Predicated region
      $region97: #{tpu_custom_call.1} parent=5 // pred_check
        %p1798 = pneg %p1797
      $region98: #{tpu_custom_call.1} parent=5 // pred_check_branch
        %1800 = sbr.rel (%p1798) target = $region100
      $region99: #{tpu_custom_call.1} parent=5 // pred_region
        %s1801 = ssub.s32 %s38, 2
        // Predicated region
        $region101: #{tpu_custom_call.1} parent=99 // pred_check
          %p1802 = pneg %p240
        $region102: #{tpu_custom_call.1} parent=99 // pred_check_branch
          %1804 = sbr.rel (%p1802) target = $region104
        $region103: #{tpu_custom_call.1} parent=99 // pred_region
          %s1805 = sand.u32 %s225, 1
          %s1806 = scalar_lea.sflag [#allocation8], %s1805
          %s1807 = sand.u32 %s225, 1
          %s1808 = smul.addr %s1807, 64
          %s1809 = scalar_lea.vmem [#allocation14], %s1808
          %1810 = dma.done %s1806, 1024
        $region104: #{tpu_custom_call.1} parent=99 // pred_fallthru
          _
        // Predicated region
        $region105: #{tpu_custom_call.1} parent=99 // pred_check
          %p1811 = pneg %p266
        $region106: #{tpu_custom_call.1} parent=99 // pred_check_branch
          %1813 = sbr.rel (%p1811) target = $region108
        $region107: #{tpu_custom_call.1} parent=99 // pred_region
          %s1814 = sand.u32 %s44, 1
          %s1815 = scalar_lea.sflag [#allocation16], %s1814
          %s1816 = sand.u32 %s251, 1
          %s1817 = smul.addr %s1816, 8
          %s1818 = scalar_lea.vmem [#allocation15], %s1817
          %1819 = dma.done %s1815, 128
        $region108: #{tpu_custom_call.1} parent=99 // pred_fallthru
          _
        // Predicated region
        $region109: #{tpu_custom_call.1} parent=99 // pred_check
          %p1820 = pneg %p292
        $region110: #{tpu_custom_call.1} parent=99 // pred_check_branch
          %1822 = sbr.rel (%p1820) target = $region112
        $region111: #{tpu_custom_call.1} parent=99 // pred_region
          %s1823 = sand.u32 %s44, 1
          %s1824 = scalar_lea.sflag [#allocation16], %s1823
          %s1825 = sand.u32 %s277, 1
          %s1826 = smul.addr %s1825, 8
          %s1827 = scalar_lea.vmem [#allocation17], %s1826
          %1828 = dma.done %s1824, 128
        $region112: #{tpu_custom_call.1} parent=99 // pred_fallthru
          _
        // Predicated region
        $region113: #{tpu_custom_call.1} parent=99 // pred_check
          %p1829 = pneg %p318
        $region114: #{tpu_custom_call.1} parent=99 // pred_check_branch
          %1831 = sbr.rel (%p1829) target = $region116
        $region115: #{tpu_custom_call.1} parent=99 // pred_region
          %s1832 = sand.u32 %s303, 1
          %s1833 = scalar_lea.sflag [#allocation19], %s1832
          %s1834 = sand.u32 %s303, 1
          %s1835 = smul.addr %s1834, 8
          %s1836 = scalar_lea.vmem [#allocation18], %s1835
          %1837 = dma.done %s1833, 128
        $region116: #{tpu_custom_call.1} parent=99 // pred_fallthru
          _
      $region100: #{tpu_custom_call.1} parent=5 // pred_fallthru
        _
    $region6: #{tpu_custom_call.1} parent=1 // loop_footer
      %s42 = sadd.s32 1, %s38
    $region7: #{tpu_custom_call.1} parent=1 // loop_footer_branch
      %37 = sbr.rel target = $region3
    $region8: #{tpu_custom_call.1} parent=1 // loop_exit
      _
    %1838 = vsyncpa [#allocation7], 1
    %s1839 = scalar_lea.sflag [#allocation7], 1
    %1840 = vsyncpa %s1839, 1
    %1841 = vsyncpa [#allocation10], 1
    %1842 = vsyncpa [#allocation13], 1
    %1843 = vsyncpa [#allocation8], 1
    %s1844 = scalar_lea.sflag [#allocation8], 1
    %1845 = vsyncpa %s1844, 1
    %1846 = vsyncpa [#allocation16], 1
    %s1847 = scalar_lea.sflag [#allocation16], 1
    %1848 = vsyncpa %s1847, 1
    %1849 = vsyncpa [#allocation19], 1
    %s1850 = scalar_lea.sflag [#allocation19], 1
    %1851 = vsyncpa %s1850, 1

</llo_original>
